<compile_context>
chip_gen: v6e
topology: v6e:2x2x1
jax: 0.10.0
libtpu: 0.0.40
codegen_flags: <defaults>
</compile_context>

<pallas_src>
import functools

import jax
import jax.numpy as jnp
from jax.experimental import pallas as pl
from jax.experimental.pallas import tpu as pltpu

H1, H2 = 400, 300      # logical hidden sizes (the PyTorch module)
H1P, H2P = 512, 384    # zero-padded to multiples of 128 (identical math)


def _round_up(x, m):
    return (x + m - 1) // m * m


def _critic_kernel(xT_ref, uT_ref, w1x_ref, w1u_ref, b1_ref,
                   w2_ref, b2_ref, w3_ref, b3_ref, out_ref):
    """One batch tile; batch on the lane axis (features x batch layout)."""
    x_bf = xT_ref[...].astype(jnp.bfloat16)            # (S,  TB)
    u_bf = uT_ref[...].astype(jnp.bfloat16)            # (A,  TB)

    # Layer 1 -- fused concat:  W1x @ x^T + W1u @ u^T  ==  W1 @ cat([x,u])^T
    h1 = jnp.dot(w1x_ref[...], x_bf, preferred_element_type=jnp.float32)
    h1 = h1 + jnp.dot(w1u_ref[...], u_bf, preferred_element_type=jnp.float32)
    h1 = jnp.maximum(h1 + b1_ref[...], 0.0)            # (H1P, TB) f32

    # Layer 2 -- bf16 MXU, f32 accumulate, f32 bias+ReLU.
    h2 = jnp.dot(w2_ref[...], h1.astype(jnp.bfloat16),
                 preferred_element_type=jnp.float32)
    h2 = jnp.maximum(h2 + b2_ref[...], 0.0)            # (H2P, TB) f32

    # Layer 3 (300 -> 1) on VPU + XLU: elementwise mul, reduce over the hidden
    # (sublane) axis -> lane-dense (1, TB) row.  Avoids an N=1 MXU matmul.
    q = jnp.sum(h2 * w3_ref[...], axis=0, keepdims=True) + b3_ref[...]
    out_ref[...] = q.astype(out_ref.dtype)


def init_critic_params(key, state_dim, action_dim):
    """Synthetic params in PyTorch nn.Linear layout: weight (out, in), bias (out,)."""
    in_dim = state_dim + action_dim
    ks = jax.random.split(key, 6)

    def uniform(k, shape, fan_in):
        bound = 1.0 / jnp.sqrt(jnp.float32(fan_in))
        return jax.random.uniform(k, shape, jnp.float32, -bound, bound)

    w1 = uniform(ks[0], (H1, in_dim), in_dim)
    b1 = uniform(ks[1], (H1,), in_dim)
    w2 = uniform(ks[2], (H2, H1), H1)
    b2 = uniform(ks[3], (H2,), H1)
    w3 = uniform(ks[4], (1, H2), H2)
    b3 = uniform(ks[5], (1,), H2)
    return (w1, b1, w2, b2, w3, b3)


def prepare_critic_params(params, state_dim, action_dim):
    """PyTorch-layout f32 params -> kernel layout (do this once, not per step).

    * l1 weight split into state / action halves (concat fused into the kernel)
    * hidden dims zero-padded 400->512, 300->384 (padding is exactly zero, so the
      forward pass is mathematically identical to the unpadded module)
    * the two large weights are stored bf16 for the MXU; biases / w3 stay f32.
    """
    w1, b1, w2, b2, w3, b3 = params
    f32, bf16 = jnp.float32, jnp.bfloat16

    w1x = jnp.zeros((H1P, state_dim), f32).at[:H1, :].set(w1[:, :state_dim])
    w1u = jnp.zeros((H1P, action_dim), f32).at[:H1, :].set(w1[:, state_dim:])
    b1p = jnp.zeros((H1P, 1), f32).at[:H1, 0].set(b1)
    w2p = jnp.zeros((H2P, H1P), f32).at[:H2, :H1].set(w2)
    b2p = jnp.zeros((H2P, 1), f32).at[:H2, 0].set(b2)
    w3p = jnp.zeros((H2P, 1), f32).at[:H2, 0].set(w3[0])
    b3p = b3.reshape(1, 1).astype(f32)
    return (w1x.astype(bf16), w1u.astype(bf16), b1p,
            w2p.astype(bf16), b2p, w3p, b3p)


def critic_forward(x, u, kparams, *, block_b=256):
    """x: (B, state_dim), u: (B, action_dim) -> (B, 1)."""
    w1x, w1u, b1, w2, b2, w3, b3 = kparams
    B, S = x.shape
    A = u.shape[1]

    # Batch tile lives on the lane axis -> multiple of 128; pad B to the tile.
    tb = min(block_b, _round_up(B, 128))
    bp = _round_up(B, tb)

    xT = x.T                                       # (S, B): batch on lanes
    uT = u.T                                       # (A, B)
    if bp != B:
        xT = jnp.pad(xT, ((0, 0), (0, bp - B)))    # zero rows are junk, sliced off
        uT = jnp.pad(uT, ((0, 0), (0, bp - B)))

    weight_bytes = sum(int(p.size) * p.dtype.itemsize for p in kparams)
    cost = pl.CostEstimate(
        flops=2 * bp * (S * H1P + A * H1P + H1P * H2P + H2P),
        transcendentals=0,
        bytes_accessed=weight_bytes + (S + A + 1) * bp * 4,
    )

    out = pl.pallas_call(
        _critic_kernel,
        out_shape=jax.ShapeDtypeStruct((1, bp), jnp.float32),
        grid_spec=pltpu.PrefetchScalarGridSpec(
            num_scalar_prefetch=0,
            grid=(bp // tb,),
            in_specs=[
                pl.BlockSpec((S, tb), lambda i: (0, i)),        # x^T batch tile
                pl.BlockSpec((A, tb), lambda i: (0, i)),        # u^T batch tile
                pl.BlockSpec((H1P, S), lambda i: (0, 0)),       # W1 (state cols)   - resident
                pl.BlockSpec((H1P, A), lambda i: (0, 0)),       # W1 (action cols)  - resident
                pl.BlockSpec((H1P, 1), lambda i: (0, 0)),       # b1                - resident
                pl.BlockSpec((H2P, H1P), lambda i: (0, 0)),     # W2                - resident
                pl.BlockSpec((H2P, 1), lambda i: (0, 0)),       # b2                - resident
                pl.BlockSpec((H2P, 1), lambda i: (0, 0)),       # w3 column         - resident
                pl.BlockSpec((1, 1), lambda i: (0, 0)),         # b3                - resident
            ],
            out_specs=pl.BlockSpec((1, tb), lambda i: (0, i)),  # lane-dense q row
        ),
        compiler_params=pltpu.CompilerParams(
            dimension_semantics=("parallel",)),                 # megacore over batch
        cost_estimate=cost,
    )(xT, uT, w1x, w1u, b1, w2, b2, w3, b3)

    return out[0, :B][:, None]                                  # (B, 1)


def _reference(x, u, params):
    """Pure-JAX forward of the PyTorch module, with the same bf16 rounding of
    matmul operands (f32 accumulation) the kernel uses."""
    w1, b1, w2, b2, w3, b3 = params
    bf = jnp.bfloat16
    xu = jnp.concatenate([x, u], axis=1)
    h1 = jax.nn.relu(jnp.dot(xu.astype(bf), w1.T.astype(bf),
                             preferred_element_type=jnp.float32) + b1)
    h2 = jax.nn.relu(jnp.dot(h1.astype(bf), w2.T.astype(bf),
                             preferred_element_type=jnp.float32) + b2)
    return jnp.dot(h2, w3.T) + b3


if __name__ == "__main__":
    state_dim, action_dim, batch = 8, 4, 2
    key = jax.random.PRNGKey(0)
    kp, kx, ku = jax.random.split(key, 3)

    params = init_critic_params(kp, state_dim, action_dim)
    kparams = prepare_critic_params(params, state_dim, action_dim)

    x = jax.random.normal(kx, (batch, state_dim), jnp.float32)
    u = jax.random.normal(ku, (batch, action_dim), jnp.float32)

    critic = jax.jit(functools.partial(critic_forward, kparams=kparams))
    out = jax.block_until_ready(critic(x, u))

    ref = _reference(x, u, params)
    assert out.shape == (batch, 1), out.shape
    assert jnp.allclose(out, ref, atol=1e-3, rtol=1e-3), (out, ref)

    print("KERNEL_OK")
</pallas_src>

<mosaic_0001>
module attributes {stable_mosaic.version = 11 : i64} {
  func.func @_critic_kernel(%arg0: i32, %arg1: memref<8x128xf32, #tpu.memory_space<vmem>>, %arg2: memref<4x128xf32, #tpu.memory_space<vmem>>, %arg3: memref<512x8xbf16, #tpu.memory_space<vmem>>, %arg4: memref<512x4xbf16, #tpu.memory_space<vmem>>, %arg5: memref<512x1xf32, #tpu.memory_space<vmem>>, %arg6: memref<384x512xbf16, #tpu.memory_space<vmem>>, %arg7: memref<384x1xf32, #tpu.memory_space<vmem>>, %arg8: memref<384x1xf32, #tpu.memory_space<vmem>>, %arg9: memref<1x1xf32, #tpu.memory_space<vmem>>, %arg10: memref<1x128xf32, #tpu.memory_space<vmem>>) attributes {dimension_semantics = [#tpu.dimension_semantics<parallel>], iteration_bounds = array<i64: 1>, scalar_prefetch = 0 : i64, scratch_operands = 0 : i64, tpu.core_type = #tpu.core_type<tc>, window_params = [{transform_indices = @transform_0, window_bounds = array<i64: 8, 128>}, {transform_indices = @transform_1, window_bounds = array<i64: 4, 128>}, {pipeline_mode = #tpu.pipeline_mode<synchronous>, transform_indices = @transform_2, window_bounds = array<i64: 512, 8>}, {pipeline_mode = #tpu.pipeline_mode<synchronous>, transform_indices = @transform_3, window_bounds = array<i64: 512, 4>}, {pipeline_mode = #tpu.pipeline_mode<synchronous>, transform_indices = @transform_4, window_bounds = array<i64: 512, 1>}, {pipeline_mode = #tpu.pipeline_mode<synchronous>, transform_indices = @transform_5, window_bounds = array<i64: 384, 512>}, {pipeline_mode = #tpu.pipeline_mode<synchronous>, transform_indices = @transform_6, window_bounds = array<i64: 384, 1>}, {pipeline_mode = #tpu.pipeline_mode<synchronous>, transform_indices = @transform_7, window_bounds = array<i64: 384, 1>}, {pipeline_mode = #tpu.pipeline_mode<synchronous>, transform_indices = @transform_8, window_bounds = array<i64: 1, 1>}, {transform_indices = @transform_9, window_bounds = array<i64: 1, 128>}]} {
    %c0 = arith.constant 0 : index
    %c0_0 = arith.constant 0 : index
    %0 = vector.load %arg1[%c0, %c0_0] : memref<8x128xf32, #tpu.memory_space<vmem>>, vector<8x128xf32>
    %1 = arith.truncf %0 : vector<8x128xf32> to vector<8x128xbf16>
    %c0_1 = arith.constant 0 : index
    %c0_2 = arith.constant 0 : index
    %2 = vector.load %arg2[%c0_1, %c0_2] : memref<4x128xf32, #tpu.memory_space<vmem>>, vector<4x128xf32>
    %3 = arith.truncf %2 : vector<4x128xf32> to vector<4x128xbf16>
    %c0_3 = arith.constant 0 : index
    %c0_4 = arith.constant 0 : index
    %4 = vector.load %arg3[%c0_3, %c0_4] : memref<512x8xbf16, #tpu.memory_space<vmem>>, vector<512x8xbf16>
    %cst = arith.constant dense<0.000000e+00> : vector<512x128xf32>
    %5 = tpu.matmul %4, %1, %cst {dimension_numbers = #tpu.dot_dimension_numbers<[1], [0], [0], [1], [0, 0, 1, 1], [], []>} : vector<512x8xbf16>, vector<8x128xbf16>, vector<512x128xf32> -> vector<512x128xf32>
    %c0_5 = arith.constant 0 : index
    %c0_6 = arith.constant 0 : index
    %6 = vector.load %arg4[%c0_5, %c0_6] : memref<512x4xbf16, #tpu.memory_space<vmem>>, vector<512x4xbf16>
    %cst_7 = arith.constant dense<0.000000e+00> : vector<512x128xf32>
    %7 = tpu.matmul %6, %3, %cst_7 {dimension_numbers = #tpu.dot_dimension_numbers<[1], [0], [0], [1], [0, 0, 1, 1], [], []>} : vector<512x4xbf16>, vector<4x128xbf16>, vector<512x128xf32> -> vector<512x128xf32>
    %8 = arith.addf %5, %7 : vector<512x128xf32>
    %c0_8 = arith.constant 0 : index
    %c0_9 = arith.constant 0 : index
    %9 = vector.load %arg5[%c0_8, %c0_9] : memref<512x1xf32, #tpu.memory_space<vmem>>, vector<512x1xf32>
    %10 = vector.broadcast %9 : vector<512x1xf32> to vector<512x128xf32>
    %11 = arith.addf %8, %10 : vector<512x128xf32>
    %cst_10 = arith.constant 0.000000e+00 : f32
    %12 = vector.broadcast %cst_10 : f32 to vector<512x128xf32>
    %13 = arith.maximumf %11, %12 : vector<512x128xf32>
    %c0_11 = arith.constant 0 : index
    %c0_12 = arith.constant 0 : index
    %14 = vector.load %arg6[%c0_11, %c0_12] : memref<384x512xbf16, #tpu.memory_space<vmem>>, vector<384x512xbf16>
    %15 = arith.truncf %13 : vector<512x128xf32> to vector<512x128xbf16>
    %cst_13 = arith.constant dense<0.000000e+00> : vector<384x128xf32>
    %16 = tpu.matmul %14, %15, %cst_13 {dimension_numbers = #tpu.dot_dimension_numbers<[1], [0], [0], [1], [0, 0, 1, 1], [], []>} : vector<384x512xbf16>, vector<512x128xbf16>, vector<384x128xf32> -> vector<384x128xf32>
    %c0_14 = arith.constant 0 : index
    %c0_15 = arith.constant 0 : index
    %17 = vector.load %arg7[%c0_14, %c0_15] : memref<384x1xf32, #tpu.memory_space<vmem>>, vector<384x1xf32>
    %18 = vector.broadcast %17 : vector<384x1xf32> to vector<384x128xf32>
    %19 = arith.addf %16, %18 : vector<384x128xf32>
    %cst_16 = arith.constant 0.000000e+00 : f32
    %20 = vector.broadcast %cst_16 : f32 to vector<384x128xf32>
    %21 = arith.maximumf %19, %20 : vector<384x128xf32>
    %c0_17 = arith.constant 0 : index
    %c0_18 = arith.constant 0 : index
    %22 = vector.load %arg8[%c0_17, %c0_18] : memref<384x1xf32, #tpu.memory_space<vmem>>, vector<384x1xf32>
    %23 = vector.broadcast %22 : vector<384x1xf32> to vector<384x128xf32>
    %24 = arith.mulf %21, %23 : vector<384x128xf32>
    %cst_19 = arith.constant dense<0.000000e+00> : vector<128xf32>
    %25 = vector.multi_reduction <add>, %24, %cst_19 [0] : vector<384x128xf32> to vector<128xf32>
    %26 = vector.shape_cast %25 : vector<128xf32> to vector<1x128xf32>
    %c0_20 = arith.constant 0 : index
    %c0_21 = arith.constant 0 : index
    %27 = vector.load %arg9[%c0_20, %c0_21] : memref<1x1xf32, #tpu.memory_space<vmem>>, vector<1x1xf32>
    %28 = vector.broadcast %27 : vector<1x1xf32> to vector<1x128xf32>
    %29 = arith.addf %26, %28 : vector<1x128xf32>
    %c0_22 = arith.constant 0 : index
    %c0_23 = arith.constant 0 : index
    %30 = vector.load %arg10[%c0_22, %c0_23] : memref<1x128xf32, #tpu.memory_space<vmem>>, vector<1x128xf32>
    tpu.vector_store %arg10[%c0_22, %c0_23], %29 {strides = array<i32>} : memref<1x128xf32, #tpu.memory_space<vmem>>, vector<1x128xf32>,
    return
  }
  func.func @transform_0(%arg0: i32) -> (i32, i32) {
    %c0_i32 = arith.constant 0 : i32
    %c0_i32_0 = arith.constant 0 : i32
    return %c0_i32, %arg0 : i32, i32
  }
  func.func @transform_1(%arg0: i32) -> (i32, i32) {
    %c0_i32 = arith.constant 0 : i32
    %c0_i32_0 = arith.constant 0 : i32
    return %c0_i32, %arg0 : i32, i32
  }
  func.func @transform_2(%arg0: i32) -> (i32, i32) {
    %c0_i32 = arith.constant 0 : i32
    %c0_i32_0 = arith.constant 0 : i32
    %c0_i32_1 = arith.constant 0 : i32
    return %c0_i32, %c0_i32_0 : i32, i32
  }
  func.func @transform_3(%arg0: i32) -> (i32, i32) {
    %c0_i32 = arith.constant 0 : i32
    %c0_i32_0 = arith.constant 0 : i32
    %c0_i32_1 = arith.constant 0 : i32
    return %c0_i32, %c0_i32_0 : i32, i32
  }
  func.func @transform_4(%arg0: i32) -> (i32, i32) {
    %c0_i32 = arith.constant 0 : i32
    %c0_i32_0 = arith.constant 0 : i32
    %c0_i32_1 = arith.constant 0 : i32
    return %c0_i32, %c0_i32_0 : i32, i32
  }
  func.func @transform_5(%arg0: i32) -> (i32, i32) {
    %c0_i32 = arith.constant 0 : i32
    %c0_i32_0 = arith.constant 0 : i32
    %c0_i32_1 = arith.constant 0 : i32
    return %c0_i32, %c0_i32_0 : i32, i32
  }
  func.func @transform_6(%arg0: i32) -> (i32, i32) {
    %c0_i32 = arith.constant 0 : i32
    %c0_i32_0 = arith.constant 0 : i32
    %c0_i32_1 = arith.constant 0 : i32
    return %c0_i32, %c0_i32_0 : i32, i32
  }
  func.func @transform_7(%arg0: i32) -> (i32, i32) {
    %c0_i32 = arith.constant 0 : i32
    %c0_i32_0 = arith.constant 0 : i32
    %c0_i32_1 = arith.constant 0 : i32
    return %c0_i32, %c0_i32_0 : i32, i32
  }
  func.func @transform_8(%arg0: i32) -> (i32, i32) {
    %c0_i32 = arith.constant 0 : i32
    %c0_i32_0 = arith.constant 0 : i32
    %c0_i32_1 = arith.constant 0 : i32
    return %c0_i32, %c0_i32_0 : i32, i32
  }
  func.func @transform_9(%arg0: i32) -> (i32, i32) {
    %c0_i32 = arith.constant 0 : i32
    %c0_i32_0 = arith.constant 0 : i32
    return %c0_i32, %arg0 : i32, i32
  }
}

</mosaic_0001>

<llo_original>
// kernel: critic_forward.1
$region0: #{critic_forward.1}
  #allocation0 [shape = 'u32[]', space=smem, size = 0x4, offset = 0x4, fixed_abs, tag = 'smem constant byte address 0x4 - core index']
  #allocation1 [shape = 'u32[144,128]{1,0:T(1,128)}', space=vmem, size = 0x12000, scoped, tag = 'internal scratch']
  #allocation2 [shape = 'f32[1,1]{1,0:T(1,128)S(1)}', space=vmem, size = 0x200, scoped, tag = 'scoped memory for critic_forward.1']
  %s0 = inlined_call_operand.vmem [shape: f32[8,128], index: 0, kind: input, shape index: {}]
  %s1 = inlined_call_operand.vmem [shape: f32[4,128], index: 1, kind: input, shape index: {}]
  %s2 = inlined_call_operand.hbm [shape: bf16[512,8], index: 2, kind: input, shape index: {}]
  %s3 = inlined_call_operand.hbm [shape: bf16[512,4], index: 3, kind: input, shape index: {}]
  %s4 = inlined_call_operand.hbm [shape: f32[512,1], index: 4, kind: input, shape index: {}]
  %s5 = inlined_call_operand.hbm [shape: bf16[384,512], index: 5, kind: input, shape index: {}]
  %s6 = inlined_call_operand.hbm [shape: f32[384,1], index: 6, kind: input, shape index: {}]
  %s7 = inlined_call_operand.hbm [shape: f32[384,1], index: 7, kind: input, shape index: {}]
  %s8 = inlined_call_operand.<no memory space> [shape: f32[1,1], index: 8, kind: input, shape index: {}]
  %s9 = inlined_call_operand.vmem [shape: f32[1,128], index: 9, kind: output, shape index: {}]
  %s10 = sld [smem:[#allocation0]]
  $region70: #{critic_forward.1} parent=0
    _
  %s12 = ssub.s32 1, %s10
  %s13 = scalar_select 0, %s12, %s10
  %v14 = vstv %s8
  %15 = vst [vmem:[#allocation2] sm:$0x1] %v14
  $region1: #{critic_forward.1} parent=0
    #allocation3 [shape = 'u8[131072]{0}', space=vmem, size = 0x20000, scoped, tag = 'input window, operand 2, single buffered']
    #allocation4 [shape = 's32[1]{0}', space=sflag, size = 0x4, scoped, tag = 'scoped memory for critic_forward.1']
    #allocation5 [shape = 'u8[131072]{0}', space=vmem, size = 0x20000, scoped, tag = 'input window, operand 3, single buffered']
    #allocation6 [shape = 's32[1]{0}', space=sflag, size = 0x4, scoped, tag = 'scoped memory for critic_forward.1']
    #allocation7 [shape = 'u8[262144]{0}', space=vmem, size = 0x40000, scoped, tag = 'input window, operand 4, single buffered']
    #allocation8 [shape = 'u8[393216]{0}', space=vmem, size = 0x60000, scoped, tag = 'input window, operand 5, single buffered']
    #allocation9 [shape = 's32[1]{0}', space=sflag, size = 0x4, scoped, tag = 'scoped memory for critic_forward.1']
    #allocation10 [shape = 'u8[196608]{0}', space=vmem, size = 0x30000, scoped, tag = 'input window, operand 6, single buffered']
    #allocation11 [shape = 'u8[196608]{0}', space=vmem, size = 0x30000, scoped, tag = 'input window, operand 7, single buffered']
    #allocation12 [shape = 's32[1]{0}', space=sflag, size = 0x4, scoped, tag = 'scoped memory for critic_forward.1']
    %16 = vsyncpa [#allocation4], 0
    %17 = vsyncpa [#allocation6], 0
    %18 = vsyncpa [#allocation9], 0
    %19 = vsyncpa [#allocation12], 0
    // Predicated region
    $region2: #{critic_forward.1} parent=1 // pred_check
      _
    $region3: #{critic_forward.1} parent=1 // pred_check_branch
      %21 = sbr.rel (0) target = $region5
    $region4: #{critic_forward.1} parent=1 // pred_region
      _
    $region5: #{critic_forward.1} parent=1 // pred_fallthru
      _
    // Predicated region
    $region6: #{critic_forward.1} parent=1 // pred_check
      _
    $region7: #{critic_forward.1} parent=1 // pred_check_branch
      %23 = sbr.rel (0) target = $region9
    $region8: #{critic_forward.1} parent=1 // pred_region
      _
    $region9: #{critic_forward.1} parent=1 // pred_fallthru
      _
    // Predicated region
    $region10: #{critic_forward.1} parent=1 // pred_check
      _
    $region11: #{critic_forward.1} parent=1 // pred_check_branch
      %25 = sbr.rel (0) target = $region13
    $region12: #{critic_forward.1} parent=1 // pred_region
      %s27 = ssub.s32 4096, 4096
      %28 = vsyncadd [#allocation4], %s27
      %s29 = sshll.u32 [#allocation3], 4
      %s30 = int_to_ptr.vmem [resolvable:$true] %s29
      %35 = dma.hbm_to_vmem [thread:$0]  %s2, 4096, %s30, [#allocation4], 64, 64, 4
    $region13: #{critic_forward.1} parent=1 // pred_fallthru
      _
    // Predicated region
    $region14: #{critic_forward.1} parent=1 // pred_check
      _
    $region15: #{critic_forward.1} parent=1 // pred_check_branch
      %37 = sbr.rel (0) target = $region17
    $region16: #{critic_forward.1} parent=1 // pred_region
      %s39 = ssub.s32 4096, 4096
      %40 = vsyncadd [#allocation6], %s39
      %s41 = sshll.u32 [#allocation5], 4
      %s42 = int_to_ptr.vmem [resolvable:$true] %s41
      %47 = dma.hbm_to_vmem [thread:$0]  %s3, 4096, %s42, [#allocation6], 64, 64, 4
    $region17: #{critic_forward.1} parent=1 // pred_fallthru
      _
    // Predicated region
    $region18: #{critic_forward.1} parent=1 // pred_check
      _
    $region19: #{critic_forward.1} parent=1 // pred_check_branch
      %49 = sbr.rel (0) target = $region21
    $region20: #{critic_forward.1} parent=1 // pred_region
      %s51 = ssub.s32 8192, 8192
      %52 = vsyncadd [#allocation6], %s51
      %s53 = sshll.u32 [#allocation7], 4
      %s54 = int_to_ptr.vmem [resolvable:$true] %s53
      %59 = dma.hbm_to_vmem [thread:$0]  %s4, 8192, %s54, [#allocation6], 128, 128, 8
    $region21: #{critic_forward.1} parent=1 // pred_fallthru
      _
    // Predicated region
    $region22: #{critic_forward.1} parent=1 // pred_check
      _
    $region23: #{critic_forward.1} parent=1 // pred_check_branch
      %61 = sbr.rel (0) target = $region25
    $region24: #{critic_forward.1} parent=1 // pred_region
      %s63 = ssub.s32 12288, 12288
      %64 = vsyncadd [#allocation9], %s63
      %s65 = sshll.u32 [#allocation8], 4
      %s66 = int_to_ptr.vmem [resolvable:$true] %s65
      %71 = dma.hbm_to_vmem [thread:$0]  %s5, 12288, %s66, [#allocation9], 256, 256, 16
    $region25: #{critic_forward.1} parent=1 // pred_fallthru
      _
    // Predicated region
    $region26: #{critic_forward.1} parent=1 // pred_check
      _
    $region27: #{critic_forward.1} parent=1 // pred_check_branch
      %73 = sbr.rel (0) target = $region29
    $region28: #{critic_forward.1} parent=1 // pred_region
      %s75 = ssub.s32 6144, 6144
      %76 = vsyncadd [#allocation9], %s75
      %s77 = sshll.u32 [#allocation10], 4
      %s78 = int_to_ptr.vmem [resolvable:$true] %s77
      %83 = dma.hbm_to_vmem [thread:$0]  %s6, 6144, %s78, [#allocation9], 128, 128, 8
    $region29: #{critic_forward.1} parent=1 // pred_fallthru
      _
    // Predicated region
    $region30: #{critic_forward.1} parent=1 // pred_check
      _
    $region31: #{critic_forward.1} parent=1 // pred_check_branch
      %85 = sbr.rel (0) target = $region33
    $region32: #{critic_forward.1} parent=1 // pred_region
      %s87 = ssub.s32 6144, 6144
      %88 = vsyncadd [#allocation12], %s87
      %s89 = sshll.u32 [#allocation11], 4
      %s90 = int_to_ptr.vmem [resolvable:$true] %s89
      %95 = dma.hbm_to_vmem [thread:$0]  %s7, 6144, %s90, [#allocation12], 128, 128, 8
    $region33: #{critic_forward.1} parent=1 // pred_fallthru
      _
    // Predicated region
    $region34: #{critic_forward.1} parent=1 // pred_check
      _
    $region35: #{critic_forward.1} parent=1 // pred_check_branch
      %97 = sbr.rel (0) target = $region37
    $region36: #{critic_forward.1} parent=1 // pred_region
      _
    $region37: #{critic_forward.1} parent=1 // pred_fallthru
      _
    // Predicated region
    $region38: #{critic_forward.1} parent=1 // pred_check
      _
    $region39: #{critic_forward.1} parent=1 // pred_check_branch
      %99 = sbr.rel (0) target = $region41
    $region40: #{critic_forward.1} parent=1 // pred_region
      %100 = dma.done [#allocation4], 4096
    $region41: #{critic_forward.1} parent=1 // pred_fallthru
      _
    // Predicated region
    $region42: #{critic_forward.1} parent=1 // pred_check
      _
    $region43: #{critic_forward.1} parent=1 // pred_check_branch
      %102 = sbr.rel (0) target = $region45
    $region44: #{critic_forward.1} parent=1 // pred_region
      %103 = dma.done [#allocation6], 4096
    $region45: #{critic_forward.1} parent=1 // pred_fallthru
      _
    // Predicated region
    $region46: #{critic_forward.1} parent=1 // pred_check
      _
    $region47: #{critic_forward.1} parent=1 // pred_check_branch
      %105 = sbr.rel (0) target = $region49
    $region48: #{critic_forward.1} parent=1 // pred_region
      %106 = dma.done [#allocation6], 8192
    $region49: #{critic_forward.1} parent=1 // pred_fallthru
      _
    // Predicated region
    $region50: #{critic_forward.1} parent=1 // pred_check
      _
    $region51: #{critic_forward.1} parent=1 // pred_check_branch
      %108 = sbr.rel (0) target = $region53
    $region52: #{critic_forward.1} parent=1 // pred_region
      %109 = dma.done [#allocation9], 12288
    $region53: #{critic_forward.1} parent=1 // pred_fallthru
      _
    // Predicated region
    $region54: #{critic_forward.1} parent=1 // pred_check
      _
    $region55: #{critic_forward.1} parent=1 // pred_check_branch
      %111 = sbr.rel (0) target = $region57
    $region56: #{critic_forward.1} parent=1 // pred_region
      %112 = dma.done [#allocation9], 6144
    $region57: #{critic_forward.1} parent=1 // pred_fallthru
      _
    // Predicated region
    $region58: #{critic_forward.1} parent=1 // pred_check
      _
    $region59: #{critic_forward.1} parent=1 // pred_check_branch
      %114 = sbr.rel (0) target = $region61
    $region60: #{critic_forward.1} parent=1 // pred_region
      %115 = dma.done [#allocation12], 6144
    $region61: #{critic_forward.1} parent=1 // pred_fallthru
      _
    %v117 = vld [vmem:[%s0] sm:$0xff]
    %v118 = vpack.c.bf16 %v117, %v117
    %v119 = vld [vmem:[%s1] sm:$0xf]
    %v120 = vpack.c.bf16 %v119, %v119
    %v121 = vld [vmem:[#allocation3] sm:$0xf]
    %v122 = vld [vmem:[#allocation3 + $0x4] sm:$0xf]
    %v123 = vld [vmem:[#allocation3 + $0x8] sm:$0xf]
    %v124 = vld [vmem:[#allocation3 + $0xc] sm:$0xf]
    %v125 = vld [vmem:[#allocation3 + $0x10] sm:$0xf]
    %v126 = vld [vmem:[#allocation3 + $0x14] sm:$0xf]
    %v127 = vld [vmem:[#allocation3 + $0x18] sm:$0xf]
    %v128 = vld [vmem:[#allocation3 + $0x1c] sm:$0xf]
    %v129 = vld [vmem:[#allocation3 + $0x20] sm:$0xf]
    %v130 = vld [vmem:[#allocation3 + $0x24] sm:$0xf]
    %v131 = vld [vmem:[#allocation3 + $0x28] sm:$0xf]
    %v132 = vld [vmem:[#allocation3 + $0x2c] sm:$0xf]
    %v133 = vld [vmem:[#allocation3 + $0x30] sm:$0xf]
    %v134 = vld [vmem:[#allocation3 + $0x34] sm:$0xf]
    %v135 = vld [vmem:[#allocation3 + $0x38] sm:$0xf]
    %v136 = vld [vmem:[#allocation3 + $0x3c] sm:$0xf]
    %v137 = vld [vmem:[#allocation3 + $0x40] sm:$0xf]
    %v138 = vld [vmem:[#allocation3 + $0x44] sm:$0xf]
    %v139 = vld [vmem:[#allocation3 + $0x48] sm:$0xf]
    %v140 = vld [vmem:[#allocation3 + $0x4c] sm:$0xf]
    %v141 = vld [vmem:[#allocation3 + $0x50] sm:$0xf]
    %v142 = vld [vmem:[#allocation3 + $0x54] sm:$0xf]
    %v143 = vld [vmem:[#allocation3 + $0x58] sm:$0xf]
    %v144 = vld [vmem:[#allocation3 + $0x5c] sm:$0xf]
    %v145 = vld [vmem:[#allocation3 + $0x60] sm:$0xf]
    %v146 = vld [vmem:[#allocation3 + $0x64] sm:$0xf]
    %v147 = vld [vmem:[#allocation3 + $0x68] sm:$0xf]
    %v148 = vld [vmem:[#allocation3 + $0x6c] sm:$0xf]
    %v149 = vld [vmem:[#allocation3 + $0x70] sm:$0xf]
    %v150 = vld [vmem:[#allocation3 + $0x74] sm:$0xf]
    %v151 = vld [vmem:[#allocation3 + $0x78] sm:$0xf]
    %v152 = vld [vmem:[#allocation3 + $0x7c] sm:$0xf]
    %v153 = vld [vmem:[#allocation3 + $0x80] sm:$0xf]
    %v154 = vld [vmem:[#allocation3 + $0x84] sm:$0xf]
    %v155 = vld [vmem:[#allocation3 + $0x88] sm:$0xf]
    %v156 = vld [vmem:[#allocation3 + $0x8c] sm:$0xf]
    %v157 = vld [vmem:[#allocation3 + $0x90] sm:$0xf]
    %v158 = vld [vmem:[#allocation3 + $0x94] sm:$0xf]
    %v159 = vld [vmem:[#allocation3 + $0x98] sm:$0xf]
    %v160 = vld [vmem:[#allocation3 + $0x9c] sm:$0xf]
    %v161 = vld [vmem:[#allocation3 + $0xa0] sm:$0xf]
    %v162 = vld [vmem:[#allocation3 + $0xa4] sm:$0xf]
    %v163 = vld [vmem:[#allocation3 + $0xa8] sm:$0xf]
    %v164 = vld [vmem:[#allocation3 + $0xac] sm:$0xf]
    %v165 = vld [vmem:[#allocation3 + $0xb0] sm:$0xf]
    %v166 = vld [vmem:[#allocation3 + $0xb4] sm:$0xf]
    %v167 = vld [vmem:[#allocation3 + $0xb8] sm:$0xf]
    %v168 = vld [vmem:[#allocation3 + $0xbc] sm:$0xf]
    %v169 = vld [vmem:[#allocation3 + $0xc0] sm:$0xf]
    %v170 = vld [vmem:[#allocation3 + $0xc4] sm:$0xf]
    %v171 = vld [vmem:[#allocation3 + $0xc8] sm:$0xf]
    %v172 = vld [vmem:[#allocation3 + $0xcc] sm:$0xf]
    %v173 = vld [vmem:[#allocation3 + $0xd0] sm:$0xf]
    %v174 = vld [vmem:[#allocation3 + $0xd4] sm:$0xf]
    %v175 = vld [vmem:[#allocation3 + $0xd8] sm:$0xf]
    %v176 = vld [vmem:[#allocation3 + $0xdc] sm:$0xf]
    %v177 = vld [vmem:[#allocation3 + $0xe0] sm:$0xf]
    %v178 = vld [vmem:[#allocation3 + $0xe4] sm:$0xf]
    %v179 = vld [vmem:[#allocation3 + $0xe8] sm:$0xf]
    %v180 = vld [vmem:[#allocation3 + $0xec] sm:$0xf]
    %v181 = vld [vmem:[#allocation3 + $0xf0] sm:$0xf]
    %v182 = vld [vmem:[#allocation3 + $0xf4] sm:$0xf]
    %v183 = vld [vmem:[#allocation3 + $0xf8] sm:$0xf]
    %v184 = vld [vmem:[#allocation3 + $0xfc] sm:$0xf]
    %v185 = vld [vmem:[#allocation5] sm:$0xf]
    %v186 = vld [vmem:[#allocation5 + $0x4] sm:$0xf]
    %v187 = vld [vmem:[#allocation5 + $0x8] sm:$0xf]
    %v188 = vld [vmem:[#allocation5 + $0xc] sm:$0xf]
    %v189 = vld [vmem:[#allocation5 + $0x10] sm:$0xf]
    %v190 = vld [vmem:[#allocation5 + $0x14] sm:$0xf]
    %v191 = vld [vmem:[#allocation5 + $0x18] sm:$0xf]
    %v192 = vld [vmem:[#allocation5 + $0x1c] sm:$0xf]
    %v193 = vld [vmem:[#allocation5 + $0x20] sm:$0xf]
    %v194 = vld [vmem:[#allocation5 + $0x24] sm:$0xf]
    %v195 = vld [vmem:[#allocation5 + $0x28] sm:$0xf]
    %v196 = vld [vmem:[#allocation5 + $0x2c] sm:$0xf]
    %v197 = vld [vmem:[#allocation5 + $0x30] sm:$0xf]
    %v198 = vld [vmem:[#allocation5 + $0x34] sm:$0xf]
    %v199 = vld [vmem:[#allocation5 + $0x38] sm:$0xf]
    %v200 = vld [vmem:[#allocation5 + $0x3c] sm:$0xf]
    %v201 = vld [vmem:[#allocation5 + $0x40] sm:$0xf]
    %v202 = vld [vmem:[#allocation5 + $0x44] sm:$0xf]
    %v203 = vld [vmem:[#allocation5 + $0x48] sm:$0xf]
    %v204 = vld [vmem:[#allocation5 + $0x4c] sm:$0xf]
    %v205 = vld [vmem:[#allocation5 + $0x50] sm:$0xf]
    %v206 = vld [vmem:[#allocation5 + $0x54] sm:$0xf]
    %v207 = vld [vmem:[#allocation5 + $0x58] sm:$0xf]
    %v208 = vld [vmem:[#allocation5 + $0x5c] sm:$0xf]
    %v209 = vld [vmem:[#allocation5 + $0x60] sm:$0xf]
    %v210 = vld [vmem:[#allocation5 + $0x64] sm:$0xf]
    %v211 = vld [vmem:[#allocation5 + $0x68] sm:$0xf]
    %v212 = vld [vmem:[#allocation5 + $0x6c] sm:$0xf]
    %v213 = vld [vmem:[#allocation5 + $0x70] sm:$0xf]
    %v214 = vld [vmem:[#allocation5 + $0x74] sm:$0xf]
    %v215 = vld [vmem:[#allocation5 + $0x78] sm:$0xf]
    %v216 = vld [vmem:[#allocation5 + $0x7c] sm:$0xf]
    %v217 = vld [vmem:[#allocation5 + $0x80] sm:$0xf]
    %v218 = vld [vmem:[#allocation5 + $0x84] sm:$0xf]
    %v219 = vld [vmem:[#allocation5 + $0x88] sm:$0xf]
    %v220 = vld [vmem:[#allocation5 + $0x8c] sm:$0xf]
    %v221 = vld [vmem:[#allocation5 + $0x90] sm:$0xf]
    %v222 = vld [vmem:[#allocation5 + $0x94] sm:$0xf]
    %v223 = vld [vmem:[#allocation5 + $0x98] sm:$0xf]
    %v224 = vld [vmem:[#allocation5 + $0x9c] sm:$0xf]
    %v225 = vld [vmem:[#allocation5 + $0xa0] sm:$0xf]
    %v226 = vld [vmem:[#allocation5 + $0xa4] sm:$0xf]
    %v227 = vld [vmem:[#allocation5 + $0xa8] sm:$0xf]
    %v228 = vld [vmem:[#allocation5 + $0xac] sm:$0xf]
    %v229 = vld [vmem:[#allocation5 + $0xb0] sm:$0xf]
    %v230 = vld [vmem:[#allocation5 + $0xb4] sm:$0xf]
    %v231 = vld [vmem:[#allocation5 + $0xb8] sm:$0xf]
    %v232 = vld [vmem:[#allocation5 + $0xbc] sm:$0xf]
    %v233 = vld [vmem:[#allocation5 + $0xc0] sm:$0xf]
    %v234 = vld [vmem:[#allocation5 + $0xc4] sm:$0xf]
    %v235 = vld [vmem:[#allocation5 + $0xc8] sm:$0xf]
    %v236 = vld [vmem:[#allocation5 + $0xcc] sm:$0xf]
    %v237 = vld [vmem:[#allocation5 + $0xd0] sm:$0xf]
    %v238 = vld [vmem:[#allocation5 + $0xd4] sm:$0xf]
    %v239 = vld [vmem:[#allocation5 + $0xd8] sm:$0xf]
    %v240 = vld [vmem:[#allocation5 + $0xdc] sm:$0xf]
    %v241 = vld [vmem:[#allocation5 + $0xe0] sm:$0xf]
    %v242 = vld [vmem:[#allocation5 + $0xe4] sm:$0xf]
    %v243 = vld [vmem:[#allocation5 + $0xe8] sm:$0xf]
    %v244 = vld [vmem:[#allocation5 + $0xec] sm:$0xf]
    %v245 = vld [vmem:[#allocation5 + $0xf0] sm:$0xf]
    %v246 = vld [vmem:[#allocation5 + $0xf4] sm:$0xf]
    %v247 = vld [vmem:[#allocation5 + $0xf8] sm:$0xf]
    %v248 = vld [vmem:[#allocation5 + $0xfc] sm:$0xf]
    %v313 = vunpack.c.l.b16 %v185
    %v314 = vunpack.c.l.b16 %v186
    %v315 = vunpack.c.l.b16 %v187
    %v316 = vunpack.c.l.b16 %v188
    %v317 = vunpack.c.l.b16 %v189
    %v318 = vunpack.c.l.b16 %v190
    %v319 = vunpack.c.l.b16 %v191
    %v320 = vunpack.c.l.b16 %v192
    %v321 = vunpack.c.l.b16 %v193
    %v322 = vunpack.c.l.b16 %v194
    %v323 = vunpack.c.l.b16 %v195
    %v324 = vunpack.c.l.b16 %v196
    %v325 = vunpack.c.l.b16 %v197
    %v326 = vunpack.c.l.b16 %v198
    %v327 = vunpack.c.l.b16 %v199
    %v328 = vunpack.c.l.b16 %v200
    %v329 = vunpack.c.l.b16 %v201
    %v330 = vunpack.c.l.b16 %v202
    %v331 = vunpack.c.l.b16 %v203
    %v332 = vunpack.c.l.b16 %v204
    %v333 = vunpack.c.l.b16 %v205
    %v334 = vunpack.c.l.b16 %v206
    %v335 = vunpack.c.l.b16 %v207
    %v336 = vunpack.c.l.b16 %v208
    %v337 = vunpack.c.l.b16 %v209
    %v338 = vunpack.c.l.b16 %v210
    %v339 = vunpack.c.l.b16 %v211
    %v340 = vunpack.c.l.b16 %v212
    %v341 = vunpack.c.l.b16 %v213
    %v342 = vunpack.c.l.b16 %v214
    %v343 = vunpack.c.l.b16 %v215
    %v344 = vunpack.c.l.b16 %v216
    %v345 = vunpack.c.l.b16 %v217
    %v346 = vunpack.c.l.b16 %v218
    %v347 = vunpack.c.l.b16 %v219
    %v348 = vunpack.c.l.b16 %v220
    %v349 = vunpack.c.l.b16 %v221
    %v350 = vunpack.c.l.b16 %v222
    %v351 = vunpack.c.l.b16 %v223
    %v352 = vunpack.c.l.b16 %v224
    %v353 = vunpack.c.l.b16 %v225
    %v354 = vunpack.c.l.b16 %v226
    %v355 = vunpack.c.l.b16 %v227
    %v356 = vunpack.c.l.b16 %v228
    %v357 = vunpack.c.l.b16 %v229
    %v358 = vunpack.c.l.b16 %v230
    %v359 = vunpack.c.l.b16 %v231
    %v360 = vunpack.c.l.b16 %v232
    %v361 = vunpack.c.l.b16 %v233
    %v362 = vunpack.c.l.b16 %v234
    %v363 = vunpack.c.l.b16 %v235
    %v364 = vunpack.c.l.b16 %v236
    %v365 = vunpack.c.l.b16 %v237
    %v366 = vunpack.c.l.b16 %v238
    %v367 = vunpack.c.l.b16 %v239
    %v368 = vunpack.c.l.b16 %v240
    %v369 = vunpack.c.l.b16 %v241
    %v370 = vunpack.c.l.b16 %v242
    %v371 = vunpack.c.l.b16 %v243
    %v372 = vunpack.c.l.b16 %v244
    %v373 = vunpack.c.l.b16 %v245
    %v374 = vunpack.c.l.b16 %v246
    %v375 = vunpack.c.l.b16 %v247
    %v376 = vunpack.c.l.b16 %v248
    %v377 = vpack.c.b16 %v314, %v313
    %v378 = vpack.c.b16 %v316, %v315
    %v379 = vpack.c.b16 %v318, %v317
    %v380 = vpack.c.b16 %v320, %v319
    %v381 = vpack.c.b16 %v322, %v321
    %v382 = vpack.c.b16 %v324, %v323
    %v383 = vpack.c.b16 %v326, %v325
    %v384 = vpack.c.b16 %v328, %v327
    %v385 = vpack.c.b16 %v330, %v329
    %v386 = vpack.c.b16 %v332, %v331
    %v387 = vpack.c.b16 %v334, %v333
    %v388 = vpack.c.b16 %v336, %v335
    %v389 = vpack.c.b16 %v338, %v337
    %v390 = vpack.c.b16 %v340, %v339
    %v391 = vpack.c.b16 %v342, %v341
    %v392 = vpack.c.b16 %v344, %v343
    %v393 = vpack.c.b16 %v346, %v345
    %v394 = vpack.c.b16 %v348, %v347
    %v395 = vpack.c.b16 %v350, %v349
    %v396 = vpack.c.b16 %v352, %v351
    %v397 = vpack.c.b16 %v354, %v353
    %v398 = vpack.c.b16 %v356, %v355
    %v399 = vpack.c.b16 %v358, %v357
    %v400 = vpack.c.b16 %v360, %v359
    %v401 = vpack.c.b16 %v362, %v361
    %v402 = vpack.c.b16 %v364, %v363
    %v403 = vpack.c.b16 %v366, %v365
    %v404 = vpack.c.b16 %v368, %v367
    %v405 = vpack.c.b16 %v370, %v369
    %v406 = vpack.c.b16 %v372, %v371
    %v407 = vpack.c.b16 %v374, %v373
    %v408 = vpack.c.b16 %v376, %v375
    %vm409 = vcmask 31744
    %v411 = vsel %vm409, %v377, 0
    %v414 = vsel %vm409, %v378, 0
    %v417 = vsel %vm409, %v379, 0
    %v420 = vsel %vm409, %v380, 0
    %v423 = vsel %vm409, %v381, 0
    %v426 = vsel %vm409, %v382, 0
    %v429 = vsel %vm409, %v383, 0
    %v432 = vsel %vm409, %v384, 0
    %v435 = vsel %vm409, %v385, 0
    %v438 = vsel %vm409, %v386, 0
    %v441 = vsel %vm409, %v387, 0
    %v444 = vsel %vm409, %v388, 0
    %v447 = vsel %vm409, %v389, 0
    %v450 = vsel %vm409, %v390, 0
    %v453 = vsel %vm409, %v391, 0
    %v456 = vsel %vm409, %v392, 0
    %v459 = vsel %vm409, %v393, 0
    %v462 = vsel %vm409, %v394, 0
    %v465 = vsel %vm409, %v395, 0
    %v468 = vsel %vm409, %v396, 0
    %v471 = vsel %vm409, %v397, 0
    %v474 = vsel %vm409, %v398, 0
    %v477 = vsel %vm409, %v399, 0
    %v480 = vsel %vm409, %v400, 0
    %v483 = vsel %vm409, %v401, 0
    %v486 = vsel %vm409, %v402, 0
    %v489 = vsel %vm409, %v403, 0
    %v492 = vsel %vm409, %v404, 0
    %v495 = vsel %vm409, %v405, 0
    %v498 = vsel %vm409, %v406, 0
    %v501 = vsel %vm409, %v407, 0
    %v504 = vsel %vm409, %v408, 0
    %vm506 = vcmask 1041408
    %v508 = vsel %vm506, %v120, 0
    %510 = vmatprep.subr.bf16.mxu0 0
    %511 = vmatpush1.bf16.msra.mxu0 0
    %512 = vmatprep.subr.bf16.mxu0 0
    %513 = vmatpush1.bf16.msra.mxu0 0
    %514 = vmatprep.subr.bf16.mxu0 0
    %515 = vmatpush1.bf16.msra.mxu0 0
    %516 = vmatprep.subr.bf16.mxu0 0
    %517 = vmatpush1.bf16.msra.mxu0 0
    %518 = vmatprep.subr.bf16.mxu0 0
    %519 = vmatpush1.bf16.msra.mxu0 0
    %520 = vmatprep.subr.bf16.mxu0 0
    %521 = vmatpush1.bf16.msra.mxu0 0
    %522 = vmatprep.subr.bf16.mxu0 0
    %523 = vmatpush1.bf16.msra.mxu0 0
    %524 = vmatprep.subr.bf16.mxu0 0
    %525 = vmatpush1.bf16.msra.mxu0 %v508
    %526 = vmatprep.subr.bf16.mxu0 0
    %527 = vmatpush2.bf16.msra.mxu0 0
    %528 = vmatprep.subr.bf16.mxu0 0
    %529 = vmatpush2.bf16.msra.mxu0 0
    %530 = vmatprep.subr.bf16.mxu0 0
    %531 = vmatpush2.bf16.msra.mxu0 0
    %532 = vmatprep.subr.bf16.mxu0 0
    %533 = vmatpush2.bf16.msra.mxu0 0
    %534 = vmatprep.subr.bf16.mxu0 0
    %535 = vmatpush2.bf16.msra.mxu0 0
    %536 = vmatprep.subr.bf16.mxu0 0
    %537 = vmatpush2.bf16.msra.mxu0 0
    %538 = vmatprep.subr.bf16.mxu0 0
    %539 = vmatpush2.bf16.msra.mxu0 0
    %540 = vmatprep.subr.bf16.mxu0 0
    %541 = vmatpush2.bf16.msra.mxu0 0
    %542 = vmatprep.mubr.bf16.mxu0 0
    %543 = vmatmul.mubr.bf16.gmra.mxu0 %v411
    %v544 = vpop.f32.mrf.mxu0
    %v545 = vadd.f32 0.0, %v544
    %v546 = vpop.f32.mrf.mxu0
    %v547 = vpop.f32.mrf.mxu0
    %v548 = vadd.f32 0.0, %v547
    %v549 = vpop.f32.mrf.mxu0
    %550 = vmatprep.mubr.bf16.mxu0 0
    %551 = vmatmul.mubr.bf16.gmra.mxu0 %v414
    %v552 = vpop.f32.mrf.mxu0
    %v553 = vadd.f32 0.0, %v552
    %v554 = vpop.f32.mrf.mxu0
    %v555 = vpop.f32.mrf.mxu0
    %v556 = vadd.f32 0.0, %v555
    %v557 = vpop.f32.mrf.mxu0
    %558 = vmatprep.mubr.bf16.mxu0 0
    %559 = vmatmul.mubr.bf16.gmra.mxu0 %v417
    %v560 = vpop.f32.mrf.mxu0
    %v561 = vadd.f32 0.0, %v560
    %v562 = vpop.f32.mrf.mxu0
    %v563 = vpop.f32.mrf.mxu0
    %v564 = vadd.f32 0.0, %v563
    %v565 = vpop.f32.mrf.mxu0
    %566 = vmatprep.mubr.bf16.mxu0 0
    %567 = vmatmul.mubr.bf16.gmra.mxu0 %v420
    %v568 = vpop.f32.mrf.mxu0
    %v569 = vadd.f32 0.0, %v568
    %v570 = vpop.f32.mrf.mxu0
    %v571 = vpop.f32.mrf.mxu0
    %v572 = vadd.f32 0.0, %v571
    %v573 = vpop.f32.mrf.mxu0
    %574 = vmatprep.mubr.bf16.mxu0 0
    %575 = vmatmul.mubr.bf16.gmra.mxu0 %v423
    %v576 = vpop.f32.mrf.mxu0
    %v577 = vadd.f32 0.0, %v576
    %v578 = vpop.f32.mrf.mxu0
    %v579 = vpop.f32.mrf.mxu0
    %v580 = vadd.f32 0.0, %v579
    %v581 = vpop.f32.mrf.mxu0
    %582 = vmatprep.mubr.bf16.mxu0 0
    %583 = vmatmul.mubr.bf16.gmra.mxu0 %v426
    %v584 = vpop.f32.mrf.mxu0
    %v585 = vadd.f32 0.0, %v584
    %v586 = vpop.f32.mrf.mxu0
    %v587 = vpop.f32.mrf.mxu0
    %v588 = vadd.f32 0.0, %v587
    %v589 = vpop.f32.mrf.mxu0
    %590 = vmatprep.mubr.bf16.mxu0 0
    %591 = vmatmul.mubr.bf16.gmra.mxu0 %v429
    %v592 = vpop.f32.mrf.mxu0
    %v593 = vadd.f32 0.0, %v592
    %v594 = vpop.f32.mrf.mxu0
    %v595 = vpop.f32.mrf.mxu0
    %v596 = vadd.f32 0.0, %v595
    %v597 = vpop.f32.mrf.mxu0
    %598 = vmatprep.mubr.bf16.mxu0 0
    %599 = vmatmul.mubr.bf16.gmra.mxu0 %v432
    %v600 = vpop.f32.mrf.mxu0
    %v601 = vadd.f32 0.0, %v600
    %v602 = vpop.f32.mrf.mxu0
    %v603 = vpop.f32.mrf.mxu0
    %v604 = vadd.f32 0.0, %v603
    %v605 = vpop.f32.mrf.mxu0
    %606 = vmatprep.mubr.bf16.mxu0 0
    %607 = vmatmul.mubr.bf16.gmra.mxu0 %v435
    %v608 = vpop.f32.mrf.mxu0
    %v609 = vadd.f32 0.0, %v608
    %v610 = vpop.f32.mrf.mxu0
    %v611 = vpop.f32.mrf.mxu0
    %v612 = vadd.f32 0.0, %v611
    %v613 = vpop.f32.mrf.mxu0
    %614 = vmatprep.mubr.bf16.mxu0 0
    %615 = vmatmul.mubr.bf16.gmra.mxu0 %v438
    %v616 = vpop.f32.mrf.mxu0
    %v617 = vadd.f32 0.0, %v616
    %v618 = vpop.f32.mrf.mxu0
    %v619 = vpop.f32.mrf.mxu0
    %v620 = vadd.f32 0.0, %v619
    %v621 = vpop.f32.mrf.mxu0
    %622 = vmatprep.mubr.bf16.mxu0 0
    %623 = vmatmul.mubr.bf16.gmra.mxu0 %v441
    %v624 = vpop.f32.mrf.mxu0
    %v625 = vadd.f32 0.0, %v624
    %v626 = vpop.f32.mrf.mxu0
    %v627 = vpop.f32.mrf.mxu0
    %v628 = vadd.f32 0.0, %v627
    %v629 = vpop.f32.mrf.mxu0
    %630 = vmatprep.mubr.bf16.mxu0 0
    %631 = vmatmul.mubr.bf16.gmra.mxu0 %v444
    %v632 = vpop.f32.mrf.mxu0
    %v633 = vadd.f32 0.0, %v632
    %v634 = vpop.f32.mrf.mxu0
    %v635 = vpop.f32.mrf.mxu0
    %v636 = vadd.f32 0.0, %v635
    %v637 = vpop.f32.mrf.mxu0
    %638 = vmatprep.mubr.bf16.mxu0 0
    %639 = vmatmul.mubr.bf16.gmra.mxu0 %v447
    %v640 = vpop.f32.mrf.mxu0
    %v641 = vadd.f32 0.0, %v640
    %v642 = vpop.f32.mrf.mxu0
    %v643 = vpop.f32.mrf.mxu0
    %v644 = vadd.f32 0.0, %v643
    %v645 = vpop.f32.mrf.mxu0
    %646 = vmatprep.mubr.bf16.mxu0 0
    %647 = vmatmul.mubr.bf16.gmra.mxu0 %v450
    %v648 = vpop.f32.mrf.mxu0
    %v649 = vadd.f32 0.0, %v648
    %v650 = vpop.f32.mrf.mxu0
    %v651 = vpop.f32.mrf.mxu0
    %v652 = vadd.f32 0.0, %v651
    %v653 = vpop.f32.mrf.mxu0
    %654 = vmatprep.mubr.bf16.mxu0 0
    %655 = vmatmul.mubr.bf16.gmra.mxu0 %v453
    %v656 = vpop.f32.mrf.mxu0
    %v657 = vadd.f32 0.0, %v656
    %v658 = vpop.f32.mrf.mxu0
    %v659 = vpop.f32.mrf.mxu0
    %v660 = vadd.f32 0.0, %v659
    %v661 = vpop.f32.mrf.mxu0
    %662 = vmatprep.mubr.bf16.mxu0 0
    %663 = vmatmul.mubr.bf16.gmra.mxu0 %v456
    %v664 = vpop.f32.mrf.mxu0
    %v665 = vadd.f32 0.0, %v664
    %v666 = vpop.f32.mrf.mxu0
    %v667 = vpop.f32.mrf.mxu0
    %v668 = vadd.f32 0.0, %v667
    %v669 = vpop.f32.mrf.mxu0
    %670 = vmatprep.mubr.bf16.mxu0 0
    %671 = vmatmul.mubr.bf16.gmra.mxu0 %v459
    %v672 = vpop.f32.mrf.mxu0
    %v673 = vadd.f32 0.0, %v672
    %v674 = vpop.f32.mrf.mxu0
    %v675 = vpop.f32.mrf.mxu0
    %v676 = vadd.f32 0.0, %v675
    %v677 = vpop.f32.mrf.mxu0
    %678 = vmatprep.mubr.bf16.mxu0 0
    %679 = vmatmul.mubr.bf16.gmra.mxu0 %v462
    %v680 = vpop.f32.mrf.mxu0
    %v681 = vadd.f32 0.0, %v680
    %v682 = vpop.f32.mrf.mxu0
    %v683 = vpop.f32.mrf.mxu0
    %v684 = vadd.f32 0.0, %v683
    %v685 = vpop.f32.mrf.mxu0
    %686 = vmatprep.mubr.bf16.mxu0 0
    %687 = vmatmul.mubr.bf16.gmra.mxu0 %v465
    %v688 = vpop.f32.mrf.mxu0
    %v689 = vadd.f32 0.0, %v688
    %v690 = vpop.f32.mrf.mxu0
    %v691 = vpop.f32.mrf.mxu0
    %v692 = vadd.f32 0.0, %v691
    %v693 = vpop.f32.mrf.mxu0
    %694 = vmatprep.mubr.bf16.mxu0 0
    %695 = vmatmul.mubr.bf16.gmra.mxu0 %v468
    %v696 = vpop.f32.mrf.mxu0
    %v697 = vadd.f32 0.0, %v696
    %v698 = vpop.f32.mrf.mxu0
    %v699 = vpop.f32.mrf.mxu0
    %v700 = vadd.f32 0.0, %v699
    %v701 = vpop.f32.mrf.mxu0
    %702 = vmatprep.mubr.bf16.mxu0 0
    %703 = vmatmul.mubr.bf16.gmra.mxu0 %v471
    %v704 = vpop.f32.mrf.mxu0
    %v705 = vadd.f32 0.0, %v704
    %v706 = vpop.f32.mrf.mxu0
    %v707 = vpop.f32.mrf.mxu0
    %v708 = vadd.f32 0.0, %v707
    %v709 = vpop.f32.mrf.mxu0
    %710 = vmatprep.mubr.bf16.mxu0 0
    %711 = vmatmul.mubr.bf16.gmra.mxu0 %v474
    %v712 = vpop.f32.mrf.mxu0
    %v713 = vadd.f32 0.0, %v712
    %v714 = vpop.f32.mrf.mxu0
    %v715 = vpop.f32.mrf.mxu0
    %v716 = vadd.f32 0.0, %v715
    %v717 = vpop.f32.mrf.mxu0
    %718 = vmatprep.mubr.bf16.mxu0 0
    %719 = vmatmul.mubr.bf16.gmra.mxu0 %v477
    %v720 = vpop.f32.mrf.mxu0
    %v721 = vadd.f32 0.0, %v720
    %v722 = vpop.f32.mrf.mxu0
    %v723 = vpop.f32.mrf.mxu0
    %v724 = vadd.f32 0.0, %v723
    %v725 = vpop.f32.mrf.mxu0
    %726 = vmatprep.mubr.bf16.mxu0 0
    %727 = vmatmul.mubr.bf16.gmra.mxu0 %v480
    %v728 = vpop.f32.mrf.mxu0
    %v729 = vadd.f32 0.0, %v728
    %v730 = vpop.f32.mrf.mxu0
    %v731 = vpop.f32.mrf.mxu0
    %v732 = vadd.f32 0.0, %v731
    %v733 = vpop.f32.mrf.mxu0
    %734 = vmatprep.mubr.bf16.mxu0 0
    %735 = vmatmul.mubr.bf16.gmra.mxu0 %v483
    %v736 = vpop.f32.mrf.mxu0
    %v737 = vadd.f32 0.0, %v736
    %v738 = vpop.f32.mrf.mxu0
    %v739 = vpop.f32.mrf.mxu0
    %v740 = vadd.f32 0.0, %v739
    %v741 = vpop.f32.mrf.mxu0
    %742 = vmatprep.mubr.bf16.mxu0 0
    %743 = vmatmul.mubr.bf16.gmra.mxu0 %v486
    %v744 = vpop.f32.mrf.mxu0
    %v745 = vadd.f32 0.0, %v744
    %v746 = vpop.f32.mrf.mxu0
    %v747 = vpop.f32.mrf.mxu0
    %v748 = vadd.f32 0.0, %v747
    %v749 = vpop.f32.mrf.mxu0
    %750 = vmatprep.mubr.bf16.mxu0 0
    %751 = vmatmul.mubr.bf16.gmra.mxu0 %v489
    %v752 = vpop.f32.mrf.mxu0
    %v753 = vadd.f32 0.0, %v752
    %v754 = vpop.f32.mrf.mxu0
    %v755 = vpop.f32.mrf.mxu0
    %v756 = vadd.f32 0.0, %v755
    %v757 = vpop.f32.mrf.mxu0
    %758 = vmatprep.mubr.bf16.mxu0 0
    %759 = vmatmul.mubr.bf16.gmra.mxu0 %v492
    %v760 = vpop.f32.mrf.mxu0
    %v761 = vadd.f32 0.0, %v760
    %v762 = vpop.f32.mrf.mxu0
    %v763 = vpop.f32.mrf.mxu0
    %v764 = vadd.f32 0.0, %v763
    %v765 = vpop.f32.mrf.mxu0
    %766 = vmatprep.mubr.bf16.mxu0 0
    %767 = vmatmul.mubr.bf16.gmra.mxu0 %v495
    %v768 = vpop.f32.mrf.mxu0
    %v769 = vadd.f32 0.0, %v768
    %v770 = vpop.f32.mrf.mxu0
    %v771 = vpop.f32.mrf.mxu0
    %v772 = vadd.f32 0.0, %v771
    %v773 = vpop.f32.mrf.mxu0
    %774 = vmatprep.mubr.bf16.mxu0 0
    %775 = vmatmul.mubr.bf16.gmra.mxu0 %v498
    %v776 = vpop.f32.mrf.mxu0
    %v777 = vadd.f32 0.0, %v776
    %v778 = vpop.f32.mrf.mxu0
    %v779 = vpop.f32.mrf.mxu0
    %v780 = vadd.f32 0.0, %v779
    %v781 = vpop.f32.mrf.mxu0
    %782 = vmatprep.mubr.bf16.mxu0 0
    %783 = vmatmul.mubr.bf16.gmra.mxu0 %v501
    %v784 = vpop.f32.mrf.mxu0
    %v785 = vadd.f32 0.0, %v784
    %v786 = vpop.f32.mrf.mxu0
    %v787 = vpop.f32.mrf.mxu0
    %v788 = vadd.f32 0.0, %v787
    %v789 = vpop.f32.mrf.mxu0
    %790 = vmatprep.mubr.bf16.mxu0 0
    %791 = vmatmul.mubr.bf16.gmra.mxu0 %v504
    %v792 = vpop.f32.mrf.mxu0
    %v793 = vadd.f32 0.0, %v792
    %v794 = vpop.f32.mrf.mxu0
    %v795 = vpop.f32.mrf.mxu0
    %v796 = vadd.f32 0.0, %v795
    %v797 = vpop.f32.mrf.mxu0
    %798 = vdwg.mxu0
    %v863 = vunpack.c.l.b16 %v121
    %v864 = vunpack.c.l.b16 %v122
    %v865 = vunpack.c.l.b16 %v123
    %v866 = vunpack.c.l.b16 %v124
    %v867 = vunpack.c.l.b16 %v125
    %v868 = vunpack.c.l.b16 %v126
    %v869 = vunpack.c.l.b16 %v127
    %v870 = vunpack.c.l.b16 %v128
    %v871 = vunpack.c.l.b16 %v129
    %v872 = vunpack.c.l.b16 %v130
    %v873 = vunpack.c.l.b16 %v131
    %v874 = vunpack.c.l.b16 %v132
    %v875 = vunpack.c.l.b16 %v133
    %v876 = vunpack.c.l.b16 %v134
    %v877 = vunpack.c.l.b16 %v135
    %v878 = vunpack.c.l.b16 %v136
    %v879 = vunpack.c.l.b16 %v137
    %v880 = vunpack.c.l.b16 %v138
    %v881 = vunpack.c.l.b16 %v139
    %v882 = vunpack.c.l.b16 %v140
    %v883 = vunpack.c.l.b16 %v141
    %v884 = vunpack.c.l.b16 %v142
    %v885 = vunpack.c.l.b16 %v143
    %v886 = vunpack.c.l.b16 %v144
    %v887 = vunpack.c.l.b16 %v145
    %v888 = vunpack.c.l.b16 %v146
    %v889 = vunpack.c.l.b16 %v147
    %v890 = vunpack.c.l.b16 %v148
    %v891 = vunpack.c.l.b16 %v149
    %v892 = vunpack.c.l.b16 %v150
    %v893 = vunpack.c.l.b16 %v151
    %v894 = vunpack.c.l.b16 %v152
    %v895 = vunpack.c.l.b16 %v153
    %v896 = vunpack.c.l.b16 %v154
    %v897 = vunpack.c.l.b16 %v155
    %v898 = vunpack.c.l.b16 %v156
    %v899 = vunpack.c.l.b16 %v157
    %v900 = vunpack.c.l.b16 %v158
    %v901 = vunpack.c.l.b16 %v159
    %v902 = vunpack.c.l.b16 %v160
    %v903 = vunpack.c.l.b16 %v161
    %v904 = vunpack.c.l.b16 %v162
    %v905 = vunpack.c.l.b16 %v163
    %v906 = vunpack.c.l.b16 %v164
    %v907 = vunpack.c.l.b16 %v165
    %v908 = vunpack.c.l.b16 %v166
    %v909 = vunpack.c.l.b16 %v167
    %v910 = vunpack.c.l.b16 %v168
    %v911 = vunpack.c.l.b16 %v169
    %v912 = vunpack.c.l.b16 %v170
    %v913 = vunpack.c.l.b16 %v171
    %v914 = vunpack.c.l.b16 %v172
    %v915 = vunpack.c.l.b16 %v173
    %v916 = vunpack.c.l.b16 %v174
    %v917 = vunpack.c.l.b16 %v175
    %v918 = vunpack.c.l.b16 %v176
    %v919 = vunpack.c.l.b16 %v177
    %v920 = vunpack.c.l.b16 %v178
    %v921 = vunpack.c.l.b16 %v179
    %v922 = vunpack.c.l.b16 %v180
    %v923 = vunpack.c.l.b16 %v181
    %v924 = vunpack.c.l.b16 %v182
    %v925 = vunpack.c.l.b16 %v183
    %v926 = vunpack.c.l.b16 %v184
    %v927 = vpack.c.b16 %v864, %v863
    %v928 = vpack.c.b16 %v866, %v865
    %v929 = vpack.c.b16 %v868, %v867
    %v930 = vpack.c.b16 %v870, %v869
    %v931 = vpack.c.b16 %v872, %v871
    %v932 = vpack.c.b16 %v874, %v873
    %v933 = vpack.c.b16 %v876, %v875
    %v934 = vpack.c.b16 %v878, %v877
    %v935 = vpack.c.b16 %v880, %v879
    %v936 = vpack.c.b16 %v882, %v881
    %v937 = vpack.c.b16 %v884, %v883
    %v938 = vpack.c.b16 %v886, %v885
    %v939 = vpack.c.b16 %v888, %v887
    %v940 = vpack.c.b16 %v890, %v889
    %v941 = vpack.c.b16 %v892, %v891
    %v942 = vpack.c.b16 %v894, %v893
    %v943 = vpack.c.b16 %v896, %v895
    %v944 = vpack.c.b16 %v898, %v897
    %v945 = vpack.c.b16 %v900, %v899
    %v946 = vpack.c.b16 %v902, %v901
    %v947 = vpack.c.b16 %v904, %v903
    %v948 = vpack.c.b16 %v906, %v905
    %v949 = vpack.c.b16 %v908, %v907
    %v950 = vpack.c.b16 %v910, %v909
    %v951 = vpack.c.b16 %v912, %v911
    %v952 = vpack.c.b16 %v914, %v913
    %v953 = vpack.c.b16 %v916, %v915
    %v954 = vpack.c.b16 %v918, %v917
    %v955 = vpack.c.b16 %v920, %v919
    %v956 = vpack.c.b16 %v922, %v921
    %v957 = vpack.c.b16 %v924, %v923
    %v958 = vpack.c.b16 %v926, %v925
    %vm959 = vcmask 64512
    %v961 = vsel %vm959, %v927, 0
    %v964 = vsel %vm959, %v928, 0
    %v967 = vsel %vm959, %v929, 0
    %v970 = vsel %vm959, %v930, 0
    %v973 = vsel %vm959, %v931, 0
    %v976 = vsel %vm959, %v932, 0
    %v979 = vsel %vm959, %v933, 0
    %v982 = vsel %vm959, %v934, 0
    %v985 = vsel %vm959, %v935, 0
    %v988 = vsel %vm959, %v936, 0
    %v991 = vsel %vm959, %v937, 0
    %v994 = vsel %vm959, %v938, 0
    %v997 = vsel %vm959, %v939, 0
    %v1000 = vsel %vm959, %v940, 0
    %v1003 = vsel %vm959, %v941, 0
    %v1006 = vsel %vm959, %v942, 0
    %v1009 = vsel %vm959, %v943, 0
    %v1012 = vsel %vm959, %v944, 0
    %v1015 = vsel %vm959, %v945, 0
    %v1018 = vsel %vm959, %v946, 0
    %v1021 = vsel %vm959, %v947, 0
    %v1024 = vsel %vm959, %v948, 0
    %v1027 = vsel %vm959, %v949, 0
    %v1030 = vsel %vm959, %v950, 0
    %v1033 = vsel %vm959, %v951, 0
    %v1036 = vsel %vm959, %v952, 0
    %v1039 = vsel %vm959, %v953, 0
    %v1042 = vsel %vm959, %v954, 0
    %v1045 = vsel %vm959, %v955, 0
    %v1048 = vsel %vm959, %v956, 0
    %v1051 = vsel %vm959, %v957, 0
    %v1054 = vsel %vm959, %v958, 0
    %vm1056 = vcmask 1043456
    %v1058 = vsel %vm1056, %v118, 0
    %1060 = vmatprep.subr.bf16.mxu0 0
    %1061 = vmatpush1.bf16.msra.mxu0 0
    %1062 = vmatprep.subr.bf16.mxu0 0
    %1063 = vmatpush1.bf16.msra.mxu0 0
    %1064 = vmatprep.subr.bf16.mxu0 0
    %1065 = vmatpush1.bf16.msra.mxu0 0
    %1066 = vmatprep.subr.bf16.mxu0 0
    %1067 = vmatpush1.bf16.msra.mxu0 0
    %1068 = vmatprep.subr.bf16.mxu0 0
    %1069 = vmatpush1.bf16.msra.mxu0 0
    %1070 = vmatprep.subr.bf16.mxu0 0
    %1071 = vmatpush1.bf16.msra.mxu0 0
    %1072 = vmatprep.subr.bf16.mxu0 0
    %1073 = vmatpush1.bf16.msra.mxu0 0
    %1074 = vmatprep.subr.bf16.mxu0 0
    %1075 = vmatpush1.bf16.msra.mxu0 %v1058
    %1076 = vmatprep.subr.bf16.mxu0 0
    %1077 = vmatpush2.bf16.msra.mxu0 0
    %1078 = vmatprep.subr.bf16.mxu0 0
    %1079 = vmatpush2.bf16.msra.mxu0 0
    %1080 = vmatprep.subr.bf16.mxu0 0
    %1081 = vmatpush2.bf16.msra.mxu0 0
    %1082 = vmatprep.subr.bf16.mxu0 0
    %1083 = vmatpush2.bf16.msra.mxu0 0
    %1084 = vmatprep.subr.bf16.mxu0 0
    %1085 = vmatpush2.bf16.msra.mxu0 0
    %1086 = vmatprep.subr.bf16.mxu0 0
    %1087 = vmatpush2.bf16.msra.mxu0 0
    %1088 = vmatprep.subr.bf16.mxu0 0
    %1089 = vmatpush2.bf16.msra.mxu0 0
    %1090 = vmatprep.subr.bf16.mxu0 0
    %1091 = vmatpush2.bf16.msra.mxu0 0
    %1092 = vmatprep.mubr.bf16.mxu0 0
    %1093 = vmatmul.mubr.bf16.gmra.mxu0 %v961
    %v1094 = vpop.f32.mrf.mxu0
    %v1095 = vadd.f32 %v545, %v1094
    %v1096 = vpop.f32.mrf.mxu0
    %v1097 = vpop.f32.mrf.mxu0
    %v1098 = vadd.f32 %v548, %v1097
    %v1099 = vpop.f32.mrf.mxu0
    %1100 = vmatprep.mubr.bf16.mxu0 0
    %1101 = vmatmul.mubr.bf16.gmra.mxu0 %v964
    %v1102 = vpop.f32.mrf.mxu0
    %v1103 = vadd.f32 %v553, %v1102
    %v1104 = vpop.f32.mrf.mxu0
    %v1105 = vpop.f32.mrf.mxu0
    %v1106 = vadd.f32 %v556, %v1105
    %v1107 = vpop.f32.mrf.mxu0
    %1108 = vmatprep.mubr.bf16.mxu0 0
    %1109 = vmatmul.mubr.bf16.gmra.mxu0 %v967
    %v1110 = vpop.f32.mrf.mxu0
    %v1111 = vadd.f32 %v561, %v1110
    %v1112 = vpop.f32.mrf.mxu0
    %v1113 = vpop.f32.mrf.mxu0
    %v1114 = vadd.f32 %v564, %v1113
    %v1115 = vpop.f32.mrf.mxu0
    %1116 = vmatprep.mubr.bf16.mxu0 0
    %1117 = vmatmul.mubr.bf16.gmra.mxu0 %v970
    %v1118 = vpop.f32.mrf.mxu0
    %v1119 = vadd.f32 %v569, %v1118
    %v1120 = vpop.f32.mrf.mxu0
    %v1121 = vpop.f32.mrf.mxu0
    %v1122 = vadd.f32 %v572, %v1121
    %v1123 = vpop.f32.mrf.mxu0
    %1124 = vmatprep.mubr.bf16.mxu0 0
    %1125 = vmatmul.mubr.bf16.gmra.mxu0 %v973
    %v1126 = vpop.f32.mrf.mxu0
    %v1127 = vadd.f32 %v577, %v1126
    %v1128 = vpop.f32.mrf.mxu0
    %v1129 = vpop.f32.mrf.mxu0
    %v1130 = vadd.f32 %v580, %v1129
    %v1131 = vpop.f32.mrf.mxu0
    %1132 = vmatprep.mubr.bf16.mxu0 0
    %1133 = vmatmul.mubr.bf16.gmra.mxu0 %v976
    %v1134 = vpop.f32.mrf.mxu0
    %v1135 = vadd.f32 %v585, %v1134
    %v1136 = vpop.f32.mrf.mxu0
    %v1137 = vpop.f32.mrf.mxu0
    %v1138 = vadd.f32 %v588, %v1137
    %v1139 = vpop.f32.mrf.mxu0
    %1140 = vmatprep.mubr.bf16.mxu0 0
    %1141 = vmatmul.mubr.bf16.gmra.mxu0 %v979
    %v1142 = vpop.f32.mrf.mxu0
    %v1143 = vadd.f32 %v593, %v1142
    %v1144 = vpop.f32.mrf.mxu0
    %v1145 = vpop.f32.mrf.mxu0
    %v1146 = vadd.f32 %v596, %v1145
    %v1147 = vpop.f32.mrf.mxu0
    %1148 = vmatprep.mubr.bf16.mxu0 0
    %1149 = vmatmul.mubr.bf16.gmra.mxu0 %v982
    %v1150 = vpop.f32.mrf.mxu0
    %v1151 = vadd.f32 %v601, %v1150
    %v1152 = vpop.f32.mrf.mxu0
    %v1153 = vpop.f32.mrf.mxu0
    %v1154 = vadd.f32 %v604, %v1153
    %v1155 = vpop.f32.mrf.mxu0
    %1156 = vmatprep.mubr.bf16.mxu0 0
    %1157 = vmatmul.mubr.bf16.gmra.mxu0 %v985
    %v1158 = vpop.f32.mrf.mxu0
    %v1159 = vadd.f32 %v609, %v1158
    %v1160 = vpop.f32.mrf.mxu0
    %v1161 = vpop.f32.mrf.mxu0
    %v1162 = vadd.f32 %v612, %v1161
    %v1163 = vpop.f32.mrf.mxu0
    %1164 = vmatprep.mubr.bf16.mxu0 0
    %1165 = vmatmul.mubr.bf16.gmra.mxu0 %v988
    %v1166 = vpop.f32.mrf.mxu0
    %v1167 = vadd.f32 %v617, %v1166
    %v1168 = vpop.f32.mrf.mxu0
    %v1169 = vpop.f32.mrf.mxu0
    %v1170 = vadd.f32 %v620, %v1169
    %v1171 = vpop.f32.mrf.mxu0
    %1172 = vmatprep.mubr.bf16.mxu0 0
    %1173 = vmatmul.mubr.bf16.gmra.mxu0 %v991
    %v1174 = vpop.f32.mrf.mxu0
    %v1175 = vadd.f32 %v625, %v1174
    %v1176 = vpop.f32.mrf.mxu0
    %v1177 = vpop.f32.mrf.mxu0
    %v1178 = vadd.f32 %v628, %v1177
    %v1179 = vpop.f32.mrf.mxu0
    %1180 = vmatprep.mubr.bf16.mxu0 0
    %1181 = vmatmul.mubr.bf16.gmra.mxu0 %v994
    %v1182 = vpop.f32.mrf.mxu0
    %v1183 = vadd.f32 %v633, %v1182
    %v1184 = vpop.f32.mrf.mxu0
    %v1185 = vpop.f32.mrf.mxu0
    %v1186 = vadd.f32 %v636, %v1185
    %v1187 = vpop.f32.mrf.mxu0
    %1188 = vmatprep.mubr.bf16.mxu0 0
    %1189 = vmatmul.mubr.bf16.gmra.mxu0 %v997
    %v1190 = vpop.f32.mrf.mxu0
    %v1191 = vadd.f32 %v641, %v1190
    %v1192 = vpop.f32.mrf.mxu0
    %v1193 = vpop.f32.mrf.mxu0
    %v1194 = vadd.f32 %v644, %v1193
    %v1195 = vpop.f32.mrf.mxu0
    %1196 = vmatprep.mubr.bf16.mxu0 0
    %1197 = vmatmul.mubr.bf16.gmra.mxu0 %v1000
    %v1198 = vpop.f32.mrf.mxu0
    %v1199 = vadd.f32 %v649, %v1198
    %v1200 = vpop.f32.mrf.mxu0
    %v1201 = vpop.f32.mrf.mxu0
    %v1202 = vadd.f32 %v652, %v1201
    %v1203 = vpop.f32.mrf.mxu0
    %1204 = vmatprep.mubr.bf16.mxu0 0
    %1205 = vmatmul.mubr.bf16.gmra.mxu0 %v1003
    %v1206 = vpop.f32.mrf.mxu0
    %v1207 = vadd.f32 %v657, %v1206
    %v1208 = vpop.f32.mrf.mxu0
    %v1209 = vpop.f32.mrf.mxu0
    %v1210 = vadd.f32 %v660, %v1209
    %v1211 = vpop.f32.mrf.mxu0
    %1212 = vmatprep.mubr.bf16.mxu0 0
    %1213 = vmatmul.mubr.bf16.gmra.mxu0 %v1006
    %v1214 = vpop.f32.mrf.mxu0
    %v1215 = vadd.f32 %v665, %v1214
    %v1216 = vpop.f32.mrf.mxu0
    %v1217 = vpop.f32.mrf.mxu0
    %v1218 = vadd.f32 %v668, %v1217
    %v1219 = vpop.f32.mrf.mxu0
    %1220 = vmatprep.mubr.bf16.mxu0 0
    %1221 = vmatmul.mubr.bf16.gmra.mxu0 %v1009
    %v1222 = vpop.f32.mrf.mxu0
    %v1223 = vadd.f32 %v673, %v1222
    %v1224 = vpop.f32.mrf.mxu0
    %v1225 = vpop.f32.mrf.mxu0
    %v1226 = vadd.f32 %v676, %v1225
    %v1227 = vpop.f32.mrf.mxu0
    %1228 = vmatprep.mubr.bf16.mxu0 0
    %1229 = vmatmul.mubr.bf16.gmra.mxu0 %v1012
    %v1230 = vpop.f32.mrf.mxu0
    %v1231 = vadd.f32 %v681, %v1230
    %v1232 = vpop.f32.mrf.mxu0
    %v1233 = vpop.f32.mrf.mxu0
    %v1234 = vadd.f32 %v684, %v1233
    %v1235 = vpop.f32.mrf.mxu0
    %1236 = vmatprep.mubr.bf16.mxu0 0
    %1237 = vmatmul.mubr.bf16.gmra.mxu0 %v1015
    %v1238 = vpop.f32.mrf.mxu0
    %v1239 = vadd.f32 %v689, %v1238
    %v1240 = vpop.f32.mrf.mxu0
    %v1241 = vpop.f32.mrf.mxu0
    %v1242 = vadd.f32 %v692, %v1241
    %v1243 = vpop.f32.mrf.mxu0
    %1244 = vmatprep.mubr.bf16.mxu0 0
    %1245 = vmatmul.mubr.bf16.gmra.mxu0 %v1018
    %v1246 = vpop.f32.mrf.mxu0
    %v1247 = vadd.f32 %v697, %v1246
    %v1248 = vpop.f32.mrf.mxu0
    %v1249 = vpop.f32.mrf.mxu0
    %v1250 = vadd.f32 %v700, %v1249
    %v1251 = vpop.f32.mrf.mxu0
    %1252 = vmatprep.mubr.bf16.mxu0 0
    %1253 = vmatmul.mubr.bf16.gmra.mxu0 %v1021
    %v1254 = vpop.f32.mrf.mxu0
    %v1255 = vadd.f32 %v705, %v1254
    %v1256 = vpop.f32.mrf.mxu0
    %v1257 = vpop.f32.mrf.mxu0
    %v1258 = vadd.f32 %v708, %v1257
    %v1259 = vpop.f32.mrf.mxu0
    %1260 = vmatprep.mubr.bf16.mxu0 0
    %1261 = vmatmul.mubr.bf16.gmra.mxu0 %v1024
    %v1262 = vpop.f32.mrf.mxu0
    %v1263 = vadd.f32 %v713, %v1262
    %v1264 = vpop.f32.mrf.mxu0
    %v1265 = vpop.f32.mrf.mxu0
    %v1266 = vadd.f32 %v716, %v1265
    %v1267 = vpop.f32.mrf.mxu0
    %1268 = vmatprep.mubr.bf16.mxu0 0
    %1269 = vmatmul.mubr.bf16.gmra.mxu0 %v1027
    %v1270 = vpop.f32.mrf.mxu0
    %v1271 = vadd.f32 %v721, %v1270
    %v1272 = vpop.f32.mrf.mxu0
    %v1273 = vpop.f32.mrf.mxu0
    %v1274 = vadd.f32 %v724, %v1273
    %v1275 = vpop.f32.mrf.mxu0
    %1276 = vmatprep.mubr.bf16.mxu0 0
    %1277 = vmatmul.mubr.bf16.gmra.mxu0 %v1030
    %v1278 = vpop.f32.mrf.mxu0
    %v1279 = vadd.f32 %v729, %v1278
    %v1280 = vpop.f32.mrf.mxu0
    %v1281 = vpop.f32.mrf.mxu0
    %v1282 = vadd.f32 %v732, %v1281
    %v1283 = vpop.f32.mrf.mxu0
    %1284 = vmatprep.mubr.bf16.mxu0 0
    %1285 = vmatmul.mubr.bf16.gmra.mxu0 %v1033
    %v1286 = vpop.f32.mrf.mxu0
    %v1287 = vadd.f32 %v737, %v1286
    %v1288 = vpop.f32.mrf.mxu0
    %v1289 = vpop.f32.mrf.mxu0
    %v1290 = vadd.f32 %v740, %v1289
    %v1291 = vpop.f32.mrf.mxu0
    %1292 = vmatprep.mubr.bf16.mxu0 0
    %1293 = vmatmul.mubr.bf16.gmra.mxu0 %v1036
    %v1294 = vpop.f32.mrf.mxu0
    %v1295 = vadd.f32 %v745, %v1294
    %v1296 = vpop.f32.mrf.mxu0
    %v1297 = vpop.f32.mrf.mxu0
    %v1298 = vadd.f32 %v748, %v1297
    %v1299 = vpop.f32.mrf.mxu0
    %1300 = vmatprep.mubr.bf16.mxu0 0
    %1301 = vmatmul.mubr.bf16.gmra.mxu0 %v1039
    %v1302 = vpop.f32.mrf.mxu0
    %v1303 = vadd.f32 %v753, %v1302
    %v1304 = vpop.f32.mrf.mxu0
    %v1305 = vpop.f32.mrf.mxu0
    %v1306 = vadd.f32 %v756, %v1305
    %v1307 = vpop.f32.mrf.mxu0
    %1308 = vmatprep.mubr.bf16.mxu0 0
    %1309 = vmatmul.mubr.bf16.gmra.mxu0 %v1042
    %v1310 = vpop.f32.mrf.mxu0
    %v1311 = vadd.f32 %v761, %v1310
    %v1312 = vpop.f32.mrf.mxu0
    %v1313 = vpop.f32.mrf.mxu0
    %v1314 = vadd.f32 %v764, %v1313
    %v1315 = vpop.f32.mrf.mxu0
    %1316 = vmatprep.mubr.bf16.mxu0 0
    %1317 = vmatmul.mubr.bf16.gmra.mxu0 %v1045
    %v1318 = vpop.f32.mrf.mxu0
    %v1319 = vadd.f32 %v769, %v1318
    %v1320 = vpop.f32.mrf.mxu0
    %v1321 = vpop.f32.mrf.mxu0
    %v1322 = vadd.f32 %v772, %v1321
    %v1323 = vpop.f32.mrf.mxu0
    %1324 = vmatprep.mubr.bf16.mxu0 0
    %1325 = vmatmul.mubr.bf16.gmra.mxu0 %v1048
    %v1326 = vpop.f32.mrf.mxu0
    %v1327 = vadd.f32 %v777, %v1326
    %v1328 = vpop.f32.mrf.mxu0
    %v1329 = vpop.f32.mrf.mxu0
    %v1330 = vadd.f32 %v780, %v1329
    %v1331 = vpop.f32.mrf.mxu0
    %1332 = vmatprep.mubr.bf16.mxu0 0
    %1333 = vmatmul.mubr.bf16.gmra.mxu0 %v1051
    %v1334 = vpop.f32.mrf.mxu0
    %v1335 = vadd.f32 %v785, %v1334
    %v1336 = vpop.f32.mrf.mxu0
    %v1337 = vpop.f32.mrf.mxu0
    %v1338 = vadd.f32 %v788, %v1337
    %v1339 = vpop.f32.mrf.mxu0
    %1340 = vmatprep.mubr.bf16.mxu0 0
    %1341 = vmatmul.mubr.bf16.gmra.mxu0 %v1054
    %v1342 = vpop.f32.mrf.mxu0
    %v1343 = vadd.f32 %v793, %v1342
    %v1344 = vpop.f32.mrf.mxu0
    %v1345 = vpop.f32.mrf.mxu0
    %v1346 = vadd.f32 %v796, %v1345
    %v1347 = vpop.f32.mrf.mxu0
    %1348 = vdwg.mxu0
    %v1349 = vld [vmem:[#allocation7] sm:$0xff]
    %v1350 = vld [vmem:[#allocation7 + $0x8] sm:$0xff]
    %v1351 = vld [vmem:[#allocation7 + $0x10] sm:$0xff]
    %v1352 = vld [vmem:[#allocation7 + $0x18] sm:$0xff]
    %v1353 = vld [vmem:[#allocation7 + $0x20] sm:$0xff]
    %v1354 = vld [vmem:[#allocation7 + $0x28] sm:$0xff]
    %v1355 = vld [vmem:[#allocation7 + $0x30] sm:$0xff]
    %v1356 = vld [vmem:[#allocation7 + $0x38] sm:$0xff]
    %v1357 = vld [vmem:[#allocation7 + $0x40] sm:$0xff]
    %v1358 = vld [vmem:[#allocation7 + $0x48] sm:$0xff]
    %v1359 = vld [vmem:[#allocation7 + $0x50] sm:$0xff]
    %v1360 = vld [vmem:[#allocation7 + $0x58] sm:$0xff]
    %v1361 = vld [vmem:[#allocation7 + $0x60] sm:$0xff]
    %v1362 = vld [vmem:[#allocation7 + $0x68] sm:$0xff]
    %v1363 = vld [vmem:[#allocation7 + $0x70] sm:$0xff]
    %v1364 = vld [vmem:[#allocation7 + $0x78] sm:$0xff]
    %v1365 = vld [vmem:[#allocation7 + $0x80] sm:$0xff]
    %v1366 = vld [vmem:[#allocation7 + $0x88] sm:$0xff]
    %v1367 = vld [vmem:[#allocation7 + $0x90] sm:$0xff]
    %v1368 = vld [vmem:[#allocation7 + $0x98] sm:$0xff]
    %v1369 = vld [vmem:[#allocation7 + $0xa0] sm:$0xff]
    %v1370 = vld [vmem:[#allocation7 + $0xa8] sm:$0xff]
    %v1371 = vld [vmem:[#allocation7 + $0xb0] sm:$0xff]
    %v1372 = vld [vmem:[#allocation7 + $0xb8] sm:$0xff]
    %v1373 = vld [vmem:[#allocation7 + $0xc0] sm:$0xff]
    %v1374 = vld [vmem:[#allocation7 + $0xc8] sm:$0xff]
    %v1375 = vld [vmem:[#allocation7 + $0xd0] sm:$0xff]
    %v1376 = vld [vmem:[#allocation7 + $0xd8] sm:$0xff]
    %v1377 = vld [vmem:[#allocation7 + $0xe0] sm:$0xff]
    %v1378 = vld [vmem:[#allocation7 + $0xe8] sm:$0xff]
    %v1379 = vld [vmem:[#allocation7 + $0xf0] sm:$0xff]
    %v1380 = vld [vmem:[#allocation7 + $0xf8] sm:$0xff]
    %v1381 = vld [vmem:[#allocation7 + $0x100] sm:$0xff]
    %v1382 = vld [vmem:[#allocation7 + $0x108] sm:$0xff]
    %v1383 = vld [vmem:[#allocation7 + $0x110] sm:$0xff]
    %v1384 = vld [vmem:[#allocation7 + $0x118] sm:$0xff]
    %v1385 = vld [vmem:[#allocation7 + $0x120] sm:$0xff]
    %v1386 = vld [vmem:[#allocation7 + $0x128] sm:$0xff]
    %v1387 = vld [vmem:[#allocation7 + $0x130] sm:$0xff]
    %v1388 = vld [vmem:[#allocation7 + $0x138] sm:$0xff]
    %v1389 = vld [vmem:[#allocation7 + $0x140] sm:$0xff]
    %v1390 = vld [vmem:[#allocation7 + $0x148] sm:$0xff]
    %v1391 = vld [vmem:[#allocation7 + $0x150] sm:$0xff]
    %v1392 = vld [vmem:[#allocation7 + $0x158] sm:$0xff]
    %v1393 = vld [vmem:[#allocation7 + $0x160] sm:$0xff]
    %v1394 = vld [vmem:[#allocation7 + $0x168] sm:$0xff]
    %v1395 = vld [vmem:[#allocation7 + $0x170] sm:$0xff]
    %v1396 = vld [vmem:[#allocation7 + $0x178] sm:$0xff]
    %v1397 = vld [vmem:[#allocation7 + $0x180] sm:$0xff]
    %v1398 = vld [vmem:[#allocation7 + $0x188] sm:$0xff]
    %v1399 = vld [vmem:[#allocation7 + $0x190] sm:$0xff]
    %v1400 = vld [vmem:[#allocation7 + $0x198] sm:$0xff]
    %v1401 = vld [vmem:[#allocation7 + $0x1a0] sm:$0xff]
    %v1402 = vld [vmem:[#allocation7 + $0x1a8] sm:$0xff]
    %v1403 = vld [vmem:[#allocation7 + $0x1b0] sm:$0xff]
    %v1404 = vld [vmem:[#allocation7 + $0x1b8] sm:$0xff]
    %v1405 = vld [vmem:[#allocation7 + $0x1c0] sm:$0xff]
    %v1406 = vld [vmem:[#allocation7 + $0x1c8] sm:$0xff]
    %v1407 = vld [vmem:[#allocation7 + $0x1d0] sm:$0xff]
    %v1408 = vld [vmem:[#allocation7 + $0x1d8] sm:$0xff]
    %v1409 = vld [vmem:[#allocation7 + $0x1e0] sm:$0xff]
    %v1410 = vld [vmem:[#allocation7 + $0x1e8] sm:$0xff]
    %v1411 = vld [vmem:[#allocation7 + $0x1f0] sm:$0xff]
    %v1412 = vld [vmem:[#allocation7 + $0x1f8] sm:$0xff]
    %1414 = vset.pattern.permute.xlu0 0
    %1415 = vperm.xlu0 %1414, %v1349
    %v1416 = vpop.permute.xlu0 %1415
    %1419 = vset.pattern.permute.xlu0 0
    %1420 = vperm.xlu0 %1419, %v1350
    %v1421 = vpop.permute.xlu0 %1420
    %1424 = vset.pattern.permute.xlu0 0
    %1425 = vperm.xlu0 %1424, %v1351
    %v1426 = vpop.permute.xlu0 %1425
    %1429 = vset.pattern.permute.xlu0 0
    %1430 = vperm.xlu0 %1429, %v1352
    %v1431 = vpop.permute.xlu0 %1430
    %1434 = vset.pattern.permute.xlu0 0
    %1435 = vperm.xlu0 %1434, %v1353
    %v1436 = vpop.permute.xlu0 %1435
    %1439 = vset.pattern.permute.xlu0 0
    %1440 = vperm.xlu0 %1439, %v1354
    %v1441 = vpop.permute.xlu0 %1440
    %1444 = vset.pattern.permute.xlu0 0
    %1445 = vperm.xlu0 %1444, %v1355
    %v1446 = vpop.permute.xlu0 %1445
    %1449 = vset.pattern.permute.xlu0 0
    %1450 = vperm.xlu0 %1449, %v1356
    %v1451 = vpop.permute.xlu0 %1450
    %1454 = vset.pattern.permute.xlu0 0
    %1455 = vperm.xlu0 %1454, %v1357
    %v1456 = vpop.permute.xlu0 %1455
    %1459 = vset.pattern.permute.xlu0 0
    %1460 = vperm.xlu0 %1459, %v1358
    %v1461 = vpop.permute.xlu0 %1460
    %1464 = vset.pattern.permute.xlu0 0
    %1465 = vperm.xlu0 %1464, %v1359
    %v1466 = vpop.permute.xlu0 %1465
    %1469 = vset.pattern.permute.xlu0 0
    %1470 = vperm.xlu0 %1469, %v1360
    %v1471 = vpop.permute.xlu0 %1470
    %1474 = vset.pattern.permute.xlu0 0
    %1475 = vperm.xlu0 %1474, %v1361
    %v1476 = vpop.permute.xlu0 %1475
    %1479 = vset.pattern.permute.xlu0 0
    %1480 = vperm.xlu0 %1479, %v1362
    %v1481 = vpop.permute.xlu0 %1480
    %1484 = vset.pattern.permute.xlu0 0
    %1485 = vperm.xlu0 %1484, %v1363
    %v1486 = vpop.permute.xlu0 %1485
    %1489 = vset.pattern.permute.xlu0 0
    %1490 = vperm.xlu0 %1489, %v1364
    %v1491 = vpop.permute.xlu0 %1490
    %1494 = vset.pattern.permute.xlu0 0
    %1495 = vperm.xlu0 %1494, %v1365
    %v1496 = vpop.permute.xlu0 %1495
    %1499 = vset.pattern.permute.xlu0 0
    %1500 = vperm.xlu0 %1499, %v1366
    %v1501 = vpop.permute.xlu0 %1500
    %1504 = vset.pattern.permute.xlu0 0
    %1505 = vperm.xlu0 %1504, %v1367
    %v1506 = vpop.permute.xlu0 %1505
    %1509 = vset.pattern.permute.xlu0 0
    %1510 = vperm.xlu0 %1509, %v1368
    %v1511 = vpop.permute.xlu0 %1510
    %1514 = vset.pattern.permute.xlu0 0
    %1515 = vperm.xlu0 %1514, %v1369
    %v1516 = vpop.permute.xlu0 %1515
    %1519 = vset.pattern.permute.xlu0 0
    %1520 = vperm.xlu0 %1519, %v1370
    %v1521 = vpop.permute.xlu0 %1520
    %1524 = vset.pattern.permute.xlu0 0
    %1525 = vperm.xlu0 %1524, %v1371
    %v1526 = vpop.permute.xlu0 %1525
    %1529 = vset.pattern.permute.xlu0 0
    %1530 = vperm.xlu0 %1529, %v1372
    %v1531 = vpop.permute.xlu0 %1530
    %1534 = vset.pattern.permute.xlu0 0
    %1535 = vperm.xlu0 %1534, %v1373
    %v1536 = vpop.permute.xlu0 %1535
    %1539 = vset.pattern.permute.xlu0 0
    %1540 = vperm.xlu0 %1539, %v1374
    %v1541 = vpop.permute.xlu0 %1540
    %1544 = vset.pattern.permute.xlu0 0
    %1545 = vperm.xlu0 %1544, %v1375
    %v1546 = vpop.permute.xlu0 %1545
    %1549 = vset.pattern.permute.xlu0 0
    %1550 = vperm.xlu0 %1549, %v1376
    %v1551 = vpop.permute.xlu0 %1550
    %1554 = vset.pattern.permute.xlu0 0
    %1555 = vperm.xlu0 %1554, %v1377
    %v1556 = vpop.permute.xlu0 %1555
    %1559 = vset.pattern.permute.xlu0 0
    %1560 = vperm.xlu0 %1559, %v1378
    %v1561 = vpop.permute.xlu0 %1560
    %1564 = vset.pattern.permute.xlu0 0
    %1565 = vperm.xlu0 %1564, %v1379
    %v1566 = vpop.permute.xlu0 %1565
    %1569 = vset.pattern.permute.xlu0 0
    %1570 = vperm.xlu0 %1569, %v1380
    %v1571 = vpop.permute.xlu0 %1570
    %1574 = vset.pattern.permute.xlu0 0
    %1575 = vperm.xlu0 %1574, %v1381
    %v1576 = vpop.permute.xlu0 %1575
    %1579 = vset.pattern.permute.xlu0 0
    %1580 = vperm.xlu0 %1579, %v1382
    %v1581 = vpop.permute.xlu0 %1580
    %1584 = vset.pattern.permute.xlu0 0
    %1585 = vperm.xlu0 %1584, %v1383
    %v1586 = vpop.permute.xlu0 %1585
    %1589 = vset.pattern.permute.xlu0 0
    %1590 = vperm.xlu0 %1589, %v1384
    %v1591 = vpop.permute.xlu0 %1590
    %1594 = vset.pattern.permute.xlu0 0
    %1595 = vperm.xlu0 %1594, %v1385
    %v1596 = vpop.permute.xlu0 %1595
    %1599 = vset.pattern.permute.xlu0 0
    %1600 = vperm.xlu0 %1599, %v1386
    %v1601 = vpop.permute.xlu0 %1600
    %1604 = vset.pattern.permute.xlu0 0
    %1605 = vperm.xlu0 %1604, %v1387
    %v1606 = vpop.permute.xlu0 %1605
    %1609 = vset.pattern.permute.xlu0 0
    %1610 = vperm.xlu0 %1609, %v1388
    %v1611 = vpop.permute.xlu0 %1610
    %1614 = vset.pattern.permute.xlu0 0
    %1615 = vperm.xlu0 %1614, %v1389
    %v1616 = vpop.permute.xlu0 %1615
    %1619 = vset.pattern.permute.xlu0 0
    %1620 = vperm.xlu0 %1619, %v1390
    %v1621 = vpop.permute.xlu0 %1620
    %1624 = vset.pattern.permute.xlu0 0
    %1625 = vperm.xlu0 %1624, %v1391
    %v1626 = vpop.permute.xlu0 %1625
    %1629 = vset.pattern.permute.xlu0 0
    %1630 = vperm.xlu0 %1629, %v1392
    %v1631 = vpop.permute.xlu0 %1630
    %1634 = vset.pattern.permute.xlu0 0
    %1635 = vperm.xlu0 %1634, %v1393
    %v1636 = vpop.permute.xlu0 %1635
    %1639 = vset.pattern.permute.xlu0 0
    %1640 = vperm.xlu0 %1639, %v1394
    %v1641 = vpop.permute.xlu0 %1640
    %1644 = vset.pattern.permute.xlu0 0
    %1645 = vperm.xlu0 %1644, %v1395
    %v1646 = vpop.permute.xlu0 %1645
    %1649 = vset.pattern.permute.xlu0 0
    %1650 = vperm.xlu0 %1649, %v1396
    %v1651 = vpop.permute.xlu0 %1650
    %1654 = vset.pattern.permute.xlu0 0
    %1655 = vperm.xlu0 %1654, %v1397
    %v1656 = vpop.permute.xlu0 %1655
    %1659 = vset.pattern.permute.xlu0 0
    %1660 = vperm.xlu0 %1659, %v1398
    %v1661 = vpop.permute.xlu0 %1660
    %1664 = vset.pattern.permute.xlu0 0
    %1665 = vperm.xlu0 %1664, %v1399
    %v1666 = vpop.permute.xlu0 %1665
    %1669 = vset.pattern.permute.xlu0 0
    %1670 = vperm.xlu0 %1669, %v1400
    %v1671 = vpop.permute.xlu0 %1670
    %1674 = vset.pattern.permute.xlu0 0
    %1675 = vperm.xlu0 %1674, %v1401
    %v1676 = vpop.permute.xlu0 %1675
    %1679 = vset.pattern.permute.xlu0 0
    %1680 = vperm.xlu0 %1679, %v1402
    %v1681 = vpop.permute.xlu0 %1680
    %1684 = vset.pattern.permute.xlu0 0
    %1685 = vperm.xlu0 %1684, %v1403
    %v1686 = vpop.permute.xlu0 %1685
    %1689 = vset.pattern.permute.xlu0 0
    %1690 = vperm.xlu0 %1689, %v1404
    %v1691 = vpop.permute.xlu0 %1690
    %1694 = vset.pattern.permute.xlu0 0
    %1695 = vperm.xlu0 %1694, %v1405
    %v1696 = vpop.permute.xlu0 %1695
    %1699 = vset.pattern.permute.xlu0 0
    %1700 = vperm.xlu0 %1699, %v1406
    %v1701 = vpop.permute.xlu0 %1700
    %1704 = vset.pattern.permute.xlu0 0
    %1705 = vperm.xlu0 %1704, %v1407
    %v1706 = vpop.permute.xlu0 %1705
    %1709 = vset.pattern.permute.xlu0 0
    %1710 = vperm.xlu0 %1709, %v1408
    %v1711 = vpop.permute.xlu0 %1710
    %1714 = vset.pattern.permute.xlu0 0
    %1715 = vperm.xlu0 %1714, %v1409
    %v1716 = vpop.permute.xlu0 %1715
    %1719 = vset.pattern.permute.xlu0 0
    %1720 = vperm.xlu0 %1719, %v1410
    %v1721 = vpop.permute.xlu0 %1720
    %1724 = vset.pattern.permute.xlu0 0
    %1725 = vperm.xlu0 %1724, %v1411
    %v1726 = vpop.permute.xlu0 %1725
    %1729 = vset.pattern.permute.xlu0 0
    %1730 = vperm.xlu0 %1729, %v1412
    %v1731 = vpop.permute.xlu0 %1730
    %v1733 = vadd.f32 %v1095, %v1416
    %v1734 = vadd.f32 %v1098, %v1421
    %v1735 = vadd.f32 %v1103, %v1426
    %v1736 = vadd.f32 %v1106, %v1431
    %v1737 = vadd.f32 %v1111, %v1436
    %v1738 = vadd.f32 %v1114, %v1441
    %v1739 = vadd.f32 %v1119, %v1446
    %v1740 = vadd.f32 %v1122, %v1451
    %v1741 = vadd.f32 %v1127, %v1456
    %v1742 = vadd.f32 %v1130, %v1461
    %v1743 = vadd.f32 %v1135, %v1466
    %v1744 = vadd.f32 %v1138, %v1471
    %v1745 = vadd.f32 %v1143, %v1476
    %v1746 = vadd.f32 %v1146, %v1481
    %v1747 = vadd.f32 %v1151, %v1486
    %v1748 = vadd.f32 %v1154, %v1491
    %v1749 = vadd.f32 %v1159, %v1496
    %v1750 = vadd.f32 %v1162, %v1501
    %v1751 = vadd.f32 %v1167, %v1506
    %v1752 = vadd.f32 %v1170, %v1511
    %v1753 = vadd.f32 %v1175, %v1516
    %v1754 = vadd.f32 %v1178, %v1521
    %v1755 = vadd.f32 %v1183, %v1526
    %v1756 = vadd.f32 %v1186, %v1531
    %v1757 = vadd.f32 %v1191, %v1536
    %v1758 = vadd.f32 %v1194, %v1541
    %v1759 = vadd.f32 %v1199, %v1546
    %v1760 = vadd.f32 %v1202, %v1551
    %v1761 = vadd.f32 %v1207, %v1556
    %v1762 = vadd.f32 %v1210, %v1561
    %v1763 = vadd.f32 %v1215, %v1566
    %v1764 = vadd.f32 %v1218, %v1571
    %v1765 = vadd.f32 %v1223, %v1576
    %v1766 = vadd.f32 %v1226, %v1581
    %v1767 = vadd.f32 %v1231, %v1586
    %v1768 = vadd.f32 %v1234, %v1591
    %v1769 = vadd.f32 %v1239, %v1596
    %v1770 = vadd.f32 %v1242, %v1601
    %v1771 = vadd.f32 %v1247, %v1606
    %v1772 = vadd.f32 %v1250, %v1611
    %v1773 = vadd.f32 %v1255, %v1616
    %v1774 = vadd.f32 %v1258, %v1621
    %v1775 = vadd.f32 %v1263, %v1626
    %v1776 = vadd.f32 %v1266, %v1631
    %v1777 = vadd.f32 %v1271, %v1636
    %v1778 = vadd.f32 %v1274, %v1641
    %v1779 = vadd.f32 %v1279, %v1646
    %v1780 = vadd.f32 %v1282, %v1651
    %v1781 = vadd.f32 %v1287, %v1656
    %v1782 = vadd.f32 %v1290, %v1661
    %v1783 = vadd.f32 %v1295, %v1666
    %v1784 = vadd.f32 %v1298, %v1671
    %v1785 = vadd.f32 %v1303, %v1676
    %v1786 = vadd.f32 %v1306, %v1681
    %v1787 = vadd.f32 %v1311, %v1686
    %v1788 = vadd.f32 %v1314, %v1691
    %v1789 = vadd.f32 %v1319, %v1696
    %v1790 = vadd.f32 %v1322, %v1701
    %v1791 = vadd.f32 %v1327, %v1706
    %v1792 = vadd.f32 %v1330, %v1711
    %v1793 = vadd.f32 %v1335, %v1716
    %v1794 = vadd.f32 %v1338, %v1721
    %v1795 = vadd.f32 %v1343, %v1726
    %v1796 = vadd.f32 %v1346, %v1731
    %v1797 = vmax.f32 %v1733, 0.0
    %v1798 = vmax.f32 %v1734, 0.0
    %v1799 = vmax.f32 %v1735, 0.0
    %v1800 = vmax.f32 %v1736, 0.0
    %v1801 = vmax.f32 %v1737, 0.0
    %v1802 = vmax.f32 %v1738, 0.0
    %v1803 = vmax.f32 %v1739, 0.0
    %v1804 = vmax.f32 %v1740, 0.0
    %v1805 = vmax.f32 %v1741, 0.0
    %v1806 = vmax.f32 %v1742, 0.0
    %v1807 = vmax.f32 %v1743, 0.0
    %v1808 = vmax.f32 %v1744, 0.0
    %v1809 = vmax.f32 %v1745, 0.0
    %v1810 = vmax.f32 %v1746, 0.0
    %v1811 = vmax.f32 %v1747, 0.0
    %v1812 = vmax.f32 %v1748, 0.0
    %v1813 = vmax.f32 %v1749, 0.0
    %v1814 = vmax.f32 %v1750, 0.0
    %v1815 = vmax.f32 %v1751, 0.0
    %v1816 = vmax.f32 %v1752, 0.0
    %v1817 = vmax.f32 %v1753, 0.0
    %v1818 = vmax.f32 %v1754, 0.0
    %v1819 = vmax.f32 %v1755, 0.0
    %v1820 = vmax.f32 %v1756, 0.0
    %v1821 = vmax.f32 %v1757, 0.0
    %v1822 = vmax.f32 %v1758, 0.0
    %v1823 = vmax.f32 %v1759, 0.0
    %v1824 = vmax.f32 %v1760, 0.0
    %v1825 = vmax.f32 %v1761, 0.0
    %v1826 = vmax.f32 %v1762, 0.0
    %v1827 = vmax.f32 %v1763, 0.0
    %v1828 = vmax.f32 %v1764, 0.0
    %v1829 = vmax.f32 %v1765, 0.0
    %v1830 = vmax.f32 %v1766, 0.0
    %v1831 = vmax.f32 %v1767, 0.0
    %v1832 = vmax.f32 %v1768, 0.0
    %v1833 = vmax.f32 %v1769, 0.0
    %v1834 = vmax.f32 %v1770, 0.0
    %v1835 = vmax.f32 %v1771, 0.0
    %v1836 = vmax.f32 %v1772, 0.0
    %v1837 = vmax.f32 %v1773, 0.0
    %v1838 = vmax.f32 %v1774, 0.0
    %v1839 = vmax.f32 %v1775, 0.0
    %v1840 = vmax.f32 %v1776, 0.0
    %v1841 = vmax.f32 %v1777, 0.0
    %v1842 = vmax.f32 %v1778, 0.0
    %v1843 = vmax.f32 %v1779, 0.0
    %v1844 = vmax.f32 %v1780, 0.0
    %v1845 = vmax.f32 %v1781, 0.0
    %v1846 = vmax.f32 %v1782, 0.0
    %v1847 = vmax.f32 %v1783, 0.0
    %v1848 = vmax.f32 %v1784, 0.0
    %v1849 = vmax.f32 %v1785, 0.0
    %v1850 = vmax.f32 %v1786, 0.0
    %v1851 = vmax.f32 %v1787, 0.0
    %v1852 = vmax.f32 %v1788, 0.0
    %v1853 = vmax.f32 %v1789, 0.0
    %v1854 = vmax.f32 %v1790, 0.0
    %v1855 = vmax.f32 %v1791, 0.0
    %v1856 = vmax.f32 %v1792, 0.0
    %v1857 = vmax.f32 %v1793, 0.0
    %v1858 = vmax.f32 %v1794, 0.0
    %v1859 = vmax.f32 %v1795, 0.0
    %v1860 = vmax.f32 %v1796, 0.0
    %v1861 = vld [vmem:[#allocation8] sm:$0xff]
    %v1862 = vld [vmem:[#allocation8 + $0x8] sm:$0xff]
    %v1863 = vld [vmem:[#allocation8 + $0x10] sm:$0xff]
    %v1864 = vld [vmem:[#allocation8 + $0x18] sm:$0xff]
    %v1865 = vld [vmem:[#allocation8 + $0x20] sm:$0xff]
    %v1866 = vld [vmem:[#allocation8 + $0x28] sm:$0xff]
    %v1867 = vld [vmem:[#allocation8 + $0x30] sm:$0xff]
    %v1868 = vld [vmem:[#allocation8 + $0x38] sm:$0xff]
    %v1869 = vld [vmem:[#allocation8 + $0x40] sm:$0xff]
    %v1870 = vld [vmem:[#allocation8 + $0x48] sm:$0xff]
    %v1871 = vld [vmem:[#allocation8 + $0x50] sm:$0xff]
    %v1872 = vld [vmem:[#allocation8 + $0x58] sm:$0xff]
    %v1873 = vld [vmem:[#allocation8 + $0x60] sm:$0xff]
    %v1874 = vld [vmem:[#allocation8 + $0x68] sm:$0xff]
    %v1875 = vld [vmem:[#allocation8 + $0x70] sm:$0xff]
    %v1876 = vld [vmem:[#allocation8 + $0x78] sm:$0xff]
    %v1877 = vld [vmem:[#allocation8 + $0x80] sm:$0xff]
    %v1878 = vld [vmem:[#allocation8 + $0x88] sm:$0xff]
    %v1879 = vld [vmem:[#allocation8 + $0x90] sm:$0xff]
    %v1880 = vld [vmem:[#allocation8 + $0x98] sm:$0xff]
    %v1881 = vld [vmem:[#allocation8 + $0xa0] sm:$0xff]
    %v1882 = vld [vmem:[#allocation8 + $0xa8] sm:$0xff]
    %v1883 = vld [vmem:[#allocation8 + $0xb0] sm:$0xff]
    %v1884 = vld [vmem:[#allocation8 + $0xb8] sm:$0xff]
    %v1885 = vld [vmem:[#allocation8 + $0xc0] sm:$0xff]
    %v1886 = vld [vmem:[#allocation8 + $0xc8] sm:$0xff]
    %v1887 = vld [vmem:[#allocation8 + $0xd0] sm:$0xff]
    %v1888 = vld [vmem:[#allocation8 + $0xd8] sm:$0xff]
    %v1889 = vld [vmem:[#allocation8 + $0xe0] sm:$0xff]
    %v1890 = vld [vmem:[#allocation8 + $0xe8] sm:$0xff]
    %v1891 = vld [vmem:[#allocation8 + $0xf0] sm:$0xff]
    %v1892 = vld [vmem:[#allocation8 + $0xf8] sm:$0xff]
    %v1893 = vld [vmem:[#allocation8 + $0x100] sm:$0xff]
    %v1894 = vld [vmem:[#allocation8 + $0x108] sm:$0xff]
    %v1895 = vld [vmem:[#allocation8 + $0x110] sm:$0xff]
    %v1896 = vld [vmem:[#allocation8 + $0x118] sm:$0xff]
    %v1897 = vld [vmem:[#allocation8 + $0x120] sm:$0xff]
    %v1898 = vld [vmem:[#allocation8 + $0x128] sm:$0xff]
    %v1899 = vld [vmem:[#allocation8 + $0x130] sm:$0xff]
    %v1900 = vld [vmem:[#allocation8 + $0x138] sm:$0xff]
    %v1901 = vld [vmem:[#allocation8 + $0x140] sm:$0xff]
    %v1902 = vld [vmem:[#allocation8 + $0x148] sm:$0xff]
    %v1903 = vld [vmem:[#allocation8 + $0x150] sm:$0xff]
    %v1904 = vld [vmem:[#allocation8 + $0x158] sm:$0xff]
    %v1905 = vld [vmem:[#allocation8 + $0x160] sm:$0xff]
    %v1906 = vld [vmem:[#allocation8 + $0x168] sm:$0xff]
    %v1907 = vld [vmem:[#allocation8 + $0x170] sm:$0xff]
    %v1908 = vld [vmem:[#allocation8 + $0x178] sm:$0xff]
    %v1909 = vld [vmem:[#allocation8 + $0x180] sm:$0xff]
    %v1910 = vld [vmem:[#allocation8 + $0x188] sm:$0xff]
    %v1911 = vld [vmem:[#allocation8 + $0x190] sm:$0xff]
    %v1912 = vld [vmem:[#allocation8 + $0x198] sm:$0xff]
    %v1913 = vld [vmem:[#allocation8 + $0x1a0] sm:$0xff]
    %v1914 = vld [vmem:[#allocation8 + $0x1a8] sm:$0xff]
    %v1915 = vld [vmem:[#allocation8 + $0x1b0] sm:$0xff]
    %v1916 = vld [vmem:[#allocation8 + $0x1b8] sm:$0xff]
    %v1917 = vld [vmem:[#allocation8 + $0x1c0] sm:$0xff]
    %v1918 = vld [vmem:[#allocation8 + $0x1c8] sm:$0xff]
    %v1919 = vld [vmem:[#allocation8 + $0x1d0] sm:$0xff]
    %v1920 = vld [vmem:[#allocation8 + $0x1d8] sm:$0xff]
    %v1921 = vld [vmem:[#allocation8 + $0x1e0] sm:$0xff]
    %v1922 = vld [vmem:[#allocation8 + $0x1e8] sm:$0xff]
    %v1923 = vld [vmem:[#allocation8 + $0x1f0] sm:$0xff]
    %v1924 = vld [vmem:[#allocation8 + $0x1f8] sm:$0xff]
    %v1925 = vld [vmem:[#allocation8 + $0x200] sm:$0xff]
    %v1926 = vld [vmem:[#allocation8 + $0x208] sm:$0xff]
    %v1927 = vld [vmem:[#allocation8 + $0x210] sm:$0xff]
    %v1928 = vld [vmem:[#allocation8 + $0x218] sm:$0xff]
    %v1929 = vld [vmem:[#allocation8 + $0x220] sm:$0xff]
    %v1930 = vld [vmem:[#allocation8 + $0x228] sm:$0xff]
    %v1931 = vld [vmem:[#allocation8 + $0x230] sm:$0xff]
    %v1932 = vld [vmem:[#allocation8 + $0x238] sm:$0xff]
    %v1933 = vld [vmem:[#allocation8 + $0x240] sm:$0xff]
    %v1934 = vld [vmem:[#allocation8 + $0x248] sm:$0xff]
    %v1935 = vld [vmem:[#allocation8 + $0x250] sm:$0xff]
    %v1936 = vld [vmem:[#allocation8 + $0x258] sm:$0xff]
    %v1937 = vld [vmem:[#allocation8 + $0x260] sm:$0xff]
    %v1938 = vld [vmem:[#allocation8 + $0x268] sm:$0xff]
    %v1939 = vld [vmem:[#allocation8 + $0x270] sm:$0xff]
    %v1940 = vld [vmem:[#allocation8 + $0x278] sm:$0xff]
    %v1941 = vld [vmem:[#allocation8 + $0x280] sm:$0xff]
    %v1942 = vld [vmem:[#allocation8 + $0x288] sm:$0xff]
    %v1943 = vld [vmem:[#allocation8 + $0x290] sm:$0xff]
    %v1944 = vld [vmem:[#allocation8 + $0x298] sm:$0xff]
    %v1945 = vld [vmem:[#allocation8 + $0x2a0] sm:$0xff]
    %v1946 = vld [vmem:[#allocation8 + $0x2a8] sm:$0xff]
    %v1947 = vld [vmem:[#allocation8 + $0x2b0] sm:$0xff]
    %v1948 = vld [vmem:[#allocation8 + $0x2b8] sm:$0xff]
    %v1949 = vld [vmem:[#allocation8 + $0x2c0] sm:$0xff]
    %v1950 = vld [vmem:[#allocation8 + $0x2c8] sm:$0xff]
    %v1951 = vld [vmem:[#allocation8 + $0x2d0] sm:$0xff]
    %v1952 = vld [vmem:[#allocation8 + $0x2d8] sm:$0xff]
    %v1953 = vld [vmem:[#allocation8 + $0x2e0] sm:$0xff]
    %v1954 = vld [vmem:[#allocation8 + $0x2e8] sm:$0xff]
    %v1955 = vld [vmem:[#allocation8 + $0x2f0] sm:$0xff]
    %v1956 = vld [vmem:[#allocation8 + $0x2f8] sm:$0xff]
    %v1957 = vpack.c.bf16 %v1798, %v1797
    %v1958 = vpack.c.bf16 %v1800, %v1799
    %v1959 = vpack.c.bf16 %v1802, %v1801
    %v1960 = vpack.c.bf16 %v1804, %v1803
    %v1961 = vpack.c.bf16 %v1806, %v1805
    %v1962 = vpack.c.bf16 %v1808, %v1807
    %v1963 = vpack.c.bf16 %v1810, %v1809
    %v1964 = vpack.c.bf16 %v1812, %v1811
    %v1965 = vpack.c.bf16 %v1814, %v1813
    %v1966 = vpack.c.bf16 %v1816, %v1815
    %v1967 = vpack.c.bf16 %v1818, %v1817
    %v1968 = vpack.c.bf16 %v1820, %v1819
    %v1969 = vpack.c.bf16 %v1822, %v1821
    %v1970 = vpack.c.bf16 %v1824, %v1823
    %v1971 = vpack.c.bf16 %v1826, %v1825
    %v1972 = vpack.c.bf16 %v1828, %v1827
    %v1973 = vpack.c.bf16 %v1830, %v1829
    %v1974 = vpack.c.bf16 %v1832, %v1831
    %v1975 = vpack.c.bf16 %v1834, %v1833
    %v1976 = vpack.c.bf16 %v1836, %v1835
    %v1977 = vpack.c.bf16 %v1838, %v1837
    %v1978 = vpack.c.bf16 %v1840, %v1839
    %v1979 = vpack.c.bf16 %v1842, %v1841
    %v1980 = vpack.c.bf16 %v1844, %v1843
    %v1981 = vpack.c.bf16 %v1846, %v1845
    %v1982 = vpack.c.bf16 %v1848, %v1847
    %v1983 = vpack.c.bf16 %v1850, %v1849
    %v1984 = vpack.c.bf16 %v1852, %v1851
    %v1985 = vpack.c.bf16 %v1854, %v1853
    %v1986 = vpack.c.bf16 %v1856, %v1855
    %v1987 = vpack.c.bf16 %v1858, %v1857
    %v1988 = vpack.c.bf16 %v1860, %v1859
    %v1989 = vld [vmem:[#allocation10] sm:$0xff]
    %v1990 = vld [vmem:[#allocation10 + $0x8] sm:$0xff]
    %v1991 = vld [vmem:[#allocation10 + $0x10] sm:$0xff]
    %v1992 = vld [vmem:[#allocation10 + $0x18] sm:$0xff]
    %v1993 = vld [vmem:[#allocation10 + $0x20] sm:$0xff]
    %v1994 = vld [vmem:[#allocation10 + $0x28] sm:$0xff]
    %v1995 = vld [vmem:[#allocation10 + $0x30] sm:$0xff]
    %v1996 = vld [vmem:[#allocation10 + $0x38] sm:$0xff]
    %v1997 = vld [vmem:[#allocation10 + $0x40] sm:$0xff]
    %v1998 = vld [vmem:[#allocation10 + $0x48] sm:$0xff]
    %v1999 = vld [vmem:[#allocation10 + $0x50] sm:$0xff]
    %v2000 = vld [vmem:[#allocation10 + $0x58] sm:$0xff]
    %v2001 = vld [vmem:[#allocation10 + $0x60] sm:$0xff]
    %v2002 = vld [vmem:[#allocation10 + $0x68] sm:$0xff]
    %v2003 = vld [vmem:[#allocation10 + $0x70] sm:$0xff]
    %v2004 = vld [vmem:[#allocation10 + $0x78] sm:$0xff]
    %v2005 = vld [vmem:[#allocation10 + $0x80] sm:$0xff]
    %v2006 = vld [vmem:[#allocation10 + $0x88] sm:$0xff]
    %v2007 = vld [vmem:[#allocation10 + $0x90] sm:$0xff]
    %v2008 = vld [vmem:[#allocation10 + $0x98] sm:$0xff]
    %v2009 = vld [vmem:[#allocation10 + $0xa0] sm:$0xff]
    %v2010 = vld [vmem:[#allocation10 + $0xa8] sm:$0xff]
    %v2011 = vld [vmem:[#allocation10 + $0xb0] sm:$0xff]
    %v2012 = vld [vmem:[#allocation10 + $0xb8] sm:$0xff]
    %v2013 = vld [vmem:[#allocation10 + $0xc0] sm:$0xff]
    %v2014 = vld [vmem:[#allocation10 + $0xc8] sm:$0xff]
    %v2015 = vld [vmem:[#allocation10 + $0xd0] sm:$0xff]
    %v2016 = vld [vmem:[#allocation10 + $0xd8] sm:$0xff]
    %v2017 = vld [vmem:[#allocation10 + $0xe0] sm:$0xff]
    %v2018 = vld [vmem:[#allocation10 + $0xe8] sm:$0xff]
    %v2019 = vld [vmem:[#allocation10 + $0xf0] sm:$0xff]
    %v2020 = vld [vmem:[#allocation10 + $0xf8] sm:$0xff]
    %v2021 = vld [vmem:[#allocation10 + $0x100] sm:$0xff]
    %v2022 = vld [vmem:[#allocation10 + $0x108] sm:$0xff]
    %v2023 = vld [vmem:[#allocation10 + $0x110] sm:$0xff]
    %v2024 = vld [vmem:[#allocation10 + $0x118] sm:$0xff]
    %v2025 = vld [vmem:[#allocation10 + $0x120] sm:$0xff]
    %v2026 = vld [vmem:[#allocation10 + $0x128] sm:$0xff]
    %v2027 = vld [vmem:[#allocation10 + $0x130] sm:$0xff]
    %v2028 = vld [vmem:[#allocation10 + $0x138] sm:$0xff]
    %v2029 = vld [vmem:[#allocation10 + $0x140] sm:$0xff]
    %v2030 = vld [vmem:[#allocation10 + $0x148] sm:$0xff]
    %v2031 = vld [vmem:[#allocation10 + $0x150] sm:$0xff]
    %v2032 = vld [vmem:[#allocation10 + $0x158] sm:$0xff]
    %v2033 = vld [vmem:[#allocation10 + $0x160] sm:$0xff]
    %v2034 = vld [vmem:[#allocation10 + $0x168] sm:$0xff]
    %v2035 = vld [vmem:[#allocation10 + $0x170] sm:$0xff]
    %v2036 = vld [vmem:[#allocation10 + $0x178] sm:$0xff]
    %2038 = vset.pattern.permute.xlu0 0
    %2039 = vperm.xlu0 %2038, %v1989
    %v2040 = vpop.permute.xlu0 %2039
    %2043 = vset.pattern.permute.xlu0 0
    %2044 = vperm.xlu0 %2043, %v1990
    %v2045 = vpop.permute.xlu0 %2044
    %2048 = vset.pattern.permute.xlu0 0
    %2049 = vperm.xlu0 %2048, %v1991
    %v2050 = vpop.permute.xlu0 %2049
    %2053 = vset.pattern.permute.xlu0 0
    %2054 = vperm.xlu0 %2053, %v1992
    %v2055 = vpop.permute.xlu0 %2054
    %2058 = vset.pattern.permute.xlu0 0
    %2059 = vperm.xlu0 %2058, %v1993
    %v2060 = vpop.permute.xlu0 %2059
    %2063 = vset.pattern.permute.xlu0 0
    %2064 = vperm.xlu0 %2063, %v1994
    %v2065 = vpop.permute.xlu0 %2064
    %2068 = vset.pattern.permute.xlu0 0
    %2069 = vperm.xlu0 %2068, %v1995
    %v2070 = vpop.permute.xlu0 %2069
    %2073 = vset.pattern.permute.xlu0 0
    %2074 = vperm.xlu0 %2073, %v1996
    %v2075 = vpop.permute.xlu0 %2074
    %2078 = vset.pattern.permute.xlu0 0
    %2079 = vperm.xlu0 %2078, %v1997
    %v2080 = vpop.permute.xlu0 %2079
    %2083 = vset.pattern.permute.xlu0 0
    %2084 = vperm.xlu0 %2083, %v1998
    %v2085 = vpop.permute.xlu0 %2084
    %2088 = vset.pattern.permute.xlu0 0
    %2089 = vperm.xlu0 %2088, %v1999
    %v2090 = vpop.permute.xlu0 %2089
    %2093 = vset.pattern.permute.xlu0 0
    %2094 = vperm.xlu0 %2093, %v2000
    %v2095 = vpop.permute.xlu0 %2094
    %2098 = vset.pattern.permute.xlu0 0
    %2099 = vperm.xlu0 %2098, %v2001
    %v2100 = vpop.permute.xlu0 %2099
    %2103 = vset.pattern.permute.xlu0 0
    %2104 = vperm.xlu0 %2103, %v2002
    %v2105 = vpop.permute.xlu0 %2104
    %2108 = vset.pattern.permute.xlu0 0
    %2109 = vperm.xlu0 %2108, %v2003
    %v2110 = vpop.permute.xlu0 %2109
    %2113 = vset.pattern.permute.xlu0 0
    %2114 = vperm.xlu0 %2113, %v2004
    %v2115 = vpop.permute.xlu0 %2114
    %2118 = vset.pattern.permute.xlu0 0
    %2119 = vperm.xlu0 %2118, %v2005
    %v2120 = vpop.permute.xlu0 %2119
    %2123 = vset.pattern.permute.xlu0 0
    %2124 = vperm.xlu0 %2123, %v2006
    %v2125 = vpop.permute.xlu0 %2124
    %2128 = vset.pattern.permute.xlu0 0
    %2129 = vperm.xlu0 %2128, %v2007
    %v2130 = vpop.permute.xlu0 %2129
    %2133 = vset.pattern.permute.xlu0 0
    %2134 = vperm.xlu0 %2133, %v2008
    %v2135 = vpop.permute.xlu0 %2134
    %2138 = vset.pattern.permute.xlu0 0
    %2139 = vperm.xlu0 %2138, %v2009
    %v2140 = vpop.permute.xlu0 %2139
    %2143 = vset.pattern.permute.xlu0 0
    %2144 = vperm.xlu0 %2143, %v2010
    %v2145 = vpop.permute.xlu0 %2144
    %2148 = vset.pattern.permute.xlu0 0
    %2149 = vperm.xlu0 %2148, %v2011
    %v2150 = vpop.permute.xlu0 %2149
    %2153 = vset.pattern.permute.xlu0 0
    %2154 = vperm.xlu0 %2153, %v2012
    %v2155 = vpop.permute.xlu0 %2154
    %2158 = vset.pattern.permute.xlu0 0
    %2159 = vperm.xlu0 %2158, %v2013
    %v2160 = vpop.permute.xlu0 %2159
    %2163 = vset.pattern.permute.xlu0 0
    %2164 = vperm.xlu0 %2163, %v2014
    %v2165 = vpop.permute.xlu0 %2164
    %2168 = vset.pattern.permute.xlu0 0
    %2169 = vperm.xlu0 %2168, %v2015
    %v2170 = vpop.permute.xlu0 %2169
    %2173 = vset.pattern.permute.xlu0 0
    %2174 = vperm.xlu0 %2173, %v2016
    %v2175 = vpop.permute.xlu0 %2174
    %2178 = vset.pattern.permute.xlu0 0
    %2179 = vperm.xlu0 %2178, %v2017
    %v2180 = vpop.permute.xlu0 %2179
    %2183 = vset.pattern.permute.xlu0 0
    %2184 = vperm.xlu0 %2183, %v2018
    %v2185 = vpop.permute.xlu0 %2184
    %2188 = vset.pattern.permute.xlu0 0
    %2189 = vperm.xlu0 %2188, %v2019
    %v2190 = vpop.permute.xlu0 %2189
    %2193 = vset.pattern.permute.xlu0 0
    %2194 = vperm.xlu0 %2193, %v2020
    %v2195 = vpop.permute.xlu0 %2194
    %2198 = vset.pattern.permute.xlu0 0
    %2199 = vperm.xlu0 %2198, %v2021
    %v2200 = vpop.permute.xlu0 %2199
    %2203 = vset.pattern.permute.xlu0 0
    %2204 = vperm.xlu0 %2203, %v2022
    %v2205 = vpop.permute.xlu0 %2204
    %2208 = vset.pattern.permute.xlu0 0
    %2209 = vperm.xlu0 %2208, %v2023
    %v2210 = vpop.permute.xlu0 %2209
    %2213 = vset.pattern.permute.xlu0 0
    %2214 = vperm.xlu0 %2213, %v2024
    %v2215 = vpop.permute.xlu0 %2214
    %2218 = vset.pattern.permute.xlu0 0
    %2219 = vperm.xlu0 %2218, %v2025
    %v2220 = vpop.permute.xlu0 %2219
    %2223 = vset.pattern.permute.xlu0 0
    %2224 = vperm.xlu0 %2223, %v2026
    %v2225 = vpop.permute.xlu0 %2224
    %2228 = vset.pattern.permute.xlu0 0
    %2229 = vperm.xlu0 %2228, %v2027
    %v2230 = vpop.permute.xlu0 %2229
    %2233 = vset.pattern.permute.xlu0 0
    %2234 = vperm.xlu0 %2233, %v2028
    %v2235 = vpop.permute.xlu0 %2234
    %2238 = vset.pattern.permute.xlu0 0
    %2239 = vperm.xlu0 %2238, %v2029
    %v2240 = vpop.permute.xlu0 %2239
    %2243 = vset.pattern.permute.xlu0 0
    %2244 = vperm.xlu0 %2243, %v2030
    %v2245 = vpop.permute.xlu0 %2244
    %2248 = vset.pattern.permute.xlu0 0
    %2249 = vperm.xlu0 %2248, %v2031
    %v2250 = vpop.permute.xlu0 %2249
    %2253 = vset.pattern.permute.xlu0 0
    %2254 = vperm.xlu0 %2253, %v2032
    %v2255 = vpop.permute.xlu0 %2254
    %2258 = vset.pattern.permute.xlu0 0
    %2259 = vperm.xlu0 %2258, %v2033
    %v2260 = vpop.permute.xlu0 %2259
    %2263 = vset.pattern.permute.xlu0 0
    %2264 = vperm.xlu0 %2263, %v2034
    %v2265 = vpop.permute.xlu0 %2264
    %2268 = vset.pattern.permute.xlu0 0
    %2269 = vperm.xlu0 %2268, %v2035
    %v2270 = vpop.permute.xlu0 %2269
    %2273 = vset.pattern.permute.xlu0 0
    %2274 = vperm.xlu0 %2273, %v2036
    %v2275 = vpop.permute.xlu0 %2274
    %v2373 = vunpack.c.l.b16 %v1861
    %v2374 = vunpack.c.h.b16 %v1861
    %v2375 = vunpack.c.l.b16 %v1862
    %v2376 = vunpack.c.h.b16 %v1862
    %v2377 = vunpack.c.l.b16 %v1863
    %v2378 = vunpack.c.h.b16 %v1863
    %v2379 = vunpack.c.l.b16 %v1864
    %v2380 = vunpack.c.h.b16 %v1864
    %v2381 = vunpack.c.l.b16 %v1865
    %v2382 = vunpack.c.h.b16 %v1865
    %v2383 = vunpack.c.l.b16 %v1866
    %v2384 = vunpack.c.h.b16 %v1866
    %v2385 = vunpack.c.l.b16 %v1867
    %v2386 = vunpack.c.h.b16 %v1867
    %v2387 = vunpack.c.l.b16 %v1868
    %v2388 = vunpack.c.h.b16 %v1868
    %v2389 = vunpack.c.l.b16 %v1869
    %v2390 = vunpack.c.h.b16 %v1869
    %v2391 = vunpack.c.l.b16 %v1870
    %v2392 = vunpack.c.h.b16 %v1870
    %v2393 = vunpack.c.l.b16 %v1871
    %v2394 = vunpack.c.h.b16 %v1871
    %v2395 = vunpack.c.l.b16 %v1872
    %v2396 = vunpack.c.h.b16 %v1872
    %v2397 = vunpack.c.l.b16 %v1873
    %v2398 = vunpack.c.h.b16 %v1873
    %v2399 = vunpack.c.l.b16 %v1874
    %v2400 = vunpack.c.h.b16 %v1874
    %v2401 = vunpack.c.l.b16 %v1875
    %v2402 = vunpack.c.h.b16 %v1875
    %v2403 = vunpack.c.l.b16 %v1876
    %v2404 = vunpack.c.h.b16 %v1876
    %v2405 = vunpack.c.l.b16 %v1877
    %v2406 = vunpack.c.h.b16 %v1877
    %v2407 = vunpack.c.l.b16 %v1878
    %v2408 = vunpack.c.h.b16 %v1878
    %v2409 = vunpack.c.l.b16 %v1879
    %v2410 = vunpack.c.h.b16 %v1879
    %v2411 = vunpack.c.l.b16 %v1880
    %v2412 = vunpack.c.h.b16 %v1880
    %v2413 = vunpack.c.l.b16 %v1881
    %v2414 = vunpack.c.h.b16 %v1881
    %v2415 = vunpack.c.l.b16 %v1882
    %v2416 = vunpack.c.h.b16 %v1882
    %v2417 = vunpack.c.l.b16 %v1883
    %v2418 = vunpack.c.h.b16 %v1883
    %v2419 = vunpack.c.l.b16 %v1884
    %v2420 = vunpack.c.h.b16 %v1884
    %v2421 = vunpack.c.l.b16 %v1885
    %v2422 = vunpack.c.h.b16 %v1885
    %v2423 = vunpack.c.l.b16 %v1886
    %v2424 = vunpack.c.h.b16 %v1886
    %v2425 = vunpack.c.l.b16 %v1887
    %v2426 = vunpack.c.h.b16 %v1887
    %v2427 = vunpack.c.l.b16 %v1888
    %v2428 = vunpack.c.h.b16 %v1888
    %v2429 = vunpack.c.l.b16 %v1889
    %v2430 = vunpack.c.h.b16 %v1889
    %v2431 = vunpack.c.l.b16 %v1890
    %v2432 = vunpack.c.h.b16 %v1890
    %v2433 = vunpack.c.l.b16 %v1891
    %v2434 = vunpack.c.h.b16 %v1891
    %v2435 = vunpack.c.l.b16 %v1892
    %v2436 = vunpack.c.h.b16 %v1892
    %v2437 = vunpack.c.l.b16 %v1893
    %v2438 = vunpack.c.h.b16 %v1893
    %v2439 = vunpack.c.l.b16 %v1894
    %v2440 = vunpack.c.h.b16 %v1894
    %v2441 = vunpack.c.l.b16 %v1895
    %v2442 = vunpack.c.h.b16 %v1895
    %v2443 = vunpack.c.l.b16 %v1896
    %v2444 = vunpack.c.h.b16 %v1896
    %v2445 = vunpack.c.l.b16 %v1897
    %v2446 = vunpack.c.h.b16 %v1897
    %v2447 = vunpack.c.l.b16 %v1898
    %v2448 = vunpack.c.h.b16 %v1898
    %v2449 = vunpack.c.l.b16 %v1899
    %v2450 = vunpack.c.h.b16 %v1899
    %v2451 = vunpack.c.l.b16 %v1900
    %v2452 = vunpack.c.h.b16 %v1900
    %v2453 = vunpack.c.l.b16 %v1901
    %v2454 = vunpack.c.h.b16 %v1901
    %v2455 = vunpack.c.l.b16 %v1902
    %v2456 = vunpack.c.h.b16 %v1902
    %v2457 = vunpack.c.l.b16 %v1903
    %v2458 = vunpack.c.h.b16 %v1903
    %v2459 = vunpack.c.l.b16 %v1904
    %v2460 = vunpack.c.h.b16 %v1904
    %v2461 = vunpack.c.l.b16 %v1905
    %v2462 = vunpack.c.h.b16 %v1905
    %v2463 = vunpack.c.l.b16 %v1906
    %v2464 = vunpack.c.h.b16 %v1906
    %v2465 = vunpack.c.l.b16 %v1907
    %v2466 = vunpack.c.h.b16 %v1907
    %v2467 = vunpack.c.l.b16 %v1908
    %v2468 = vunpack.c.h.b16 %v1908
    %v2469 = vunpack.c.l.b16 %v1909
    %v2470 = vunpack.c.h.b16 %v1909
    %v2471 = vunpack.c.l.b16 %v1910
    %v2472 = vunpack.c.h.b16 %v1910
    %v2473 = vunpack.c.l.b16 %v1911
    %v2474 = vunpack.c.h.b16 %v1911
    %v2475 = vunpack.c.l.b16 %v1912
    %v2476 = vunpack.c.h.b16 %v1912
    %v2477 = vunpack.c.l.b16 %v1913
    %v2478 = vunpack.c.h.b16 %v1913
    %v2479 = vunpack.c.l.b16 %v1914
    %v2480 = vunpack.c.h.b16 %v1914
    %v2481 = vunpack.c.l.b16 %v1915
    %v2482 = vunpack.c.h.b16 %v1915
    %v2483 = vunpack.c.l.b16 %v1916
    %v2484 = vunpack.c.h.b16 %v1916
    %v2485 = vunpack.c.l.b16 %v1917
    %v2486 = vunpack.c.h.b16 %v1917
    %v2487 = vunpack.c.l.b16 %v1918
    %v2488 = vunpack.c.h.b16 %v1918
    %v2489 = vunpack.c.l.b16 %v1919
    %v2490 = vunpack.c.h.b16 %v1919
    %v2491 = vunpack.c.l.b16 %v1920
    %v2492 = vunpack.c.h.b16 %v1920
    %v2493 = vunpack.c.l.b16 %v1921
    %v2494 = vunpack.c.h.b16 %v1921
    %v2495 = vunpack.c.l.b16 %v1922
    %v2496 = vunpack.c.h.b16 %v1922
    %v2497 = vunpack.c.l.b16 %v1923
    %v2498 = vunpack.c.h.b16 %v1923
    %v2499 = vunpack.c.l.b16 %v1924
    %v2500 = vunpack.c.h.b16 %v1924
    %v2501 = vunpack.c.l.b16 %v1925
    %v2502 = vunpack.c.h.b16 %v1925
    %v2503 = vunpack.c.l.b16 %v1926
    %v2504 = vunpack.c.h.b16 %v1926
    %v2505 = vunpack.c.l.b16 %v1927
    %v2506 = vunpack.c.h.b16 %v1927
    %v2507 = vunpack.c.l.b16 %v1928
    %v2508 = vunpack.c.h.b16 %v1928
    %v2509 = vunpack.c.l.b16 %v1929
    %v2510 = vunpack.c.h.b16 %v1929
    %v2511 = vunpack.c.l.b16 %v1930
    %v2512 = vunpack.c.h.b16 %v1930
    %v2513 = vunpack.c.l.b16 %v1931
    %v2514 = vunpack.c.h.b16 %v1931
    %v2515 = vunpack.c.l.b16 %v1932
    %v2516 = vunpack.c.h.b16 %v1932
    %v2517 = vunpack.c.l.b16 %v1933
    %v2518 = vunpack.c.h.b16 %v1933
    %v2519 = vunpack.c.l.b16 %v1934
    %v2520 = vunpack.c.h.b16 %v1934
    %v2521 = vunpack.c.l.b16 %v1935
    %v2522 = vunpack.c.h.b16 %v1935
    %v2523 = vunpack.c.l.b16 %v1936
    %v2524 = vunpack.c.h.b16 %v1936
    %v2525 = vunpack.c.l.b16 %v1937
    %v2526 = vunpack.c.h.b16 %v1937
    %v2527 = vunpack.c.l.b16 %v1938
    %v2528 = vunpack.c.h.b16 %v1938
    %v2529 = vunpack.c.l.b16 %v1939
    %v2530 = vunpack.c.h.b16 %v1939
    %v2531 = vunpack.c.l.b16 %v1940
    %v2532 = vunpack.c.h.b16 %v1940
    %v2533 = vunpack.c.l.b16 %v1941
    %v2534 = vunpack.c.h.b16 %v1941
    %v2535 = vunpack.c.l.b16 %v1942
    %v2536 = vunpack.c.h.b16 %v1942
    %v2537 = vunpack.c.l.b16 %v1943
    %v2538 = vunpack.c.h.b16 %v1943
    %v2539 = vunpack.c.l.b16 %v1944
    %v2540 = vunpack.c.h.b16 %v1944
    %v2541 = vunpack.c.l.b16 %v1945
    %v2542 = vunpack.c.h.b16 %v1945
    %v2543 = vunpack.c.l.b16 %v1946
    %v2544 = vunpack.c.h.b16 %v1946
    %v2545 = vunpack.c.l.b16 %v1947
    %v2546 = vunpack.c.h.b16 %v1947
    %v2547 = vunpack.c.l.b16 %v1948
    %v2548 = vunpack.c.h.b16 %v1948
    %v2549 = vunpack.c.l.b16 %v1949
    %v2550 = vunpack.c.h.b16 %v1949
    %v2551 = vunpack.c.l.b16 %v1950
    %v2552 = vunpack.c.h.b16 %v1950
    %v2553 = vunpack.c.l.b16 %v1951
    %v2554 = vunpack.c.h.b16 %v1951
    %v2555 = vunpack.c.l.b16 %v1952
    %v2556 = vunpack.c.h.b16 %v1952
    %v2557 = vunpack.c.l.b16 %v1953
    %v2558 = vunpack.c.h.b16 %v1953
    %v2559 = vunpack.c.l.b16 %v1954
    %v2560 = vunpack.c.h.b16 %v1954
    %v2561 = vunpack.c.l.b16 %v1955
    %v2562 = vunpack.c.h.b16 %v1955
    %v2563 = vunpack.c.l.b16 %v1956
    %v2564 = vunpack.c.h.b16 %v1956
    %v2565 = vpack.c.b16 %v2377, %v2373
    %v2566 = vpack.c.b16 %v2378, %v2374
    %v2567 = vpack.c.b16 %v2379, %v2375
    %v2568 = vpack.c.b16 %v2380, %v2376
    %v2569 = vpack.c.b16 %v2385, %v2381
    %v2570 = vpack.c.b16 %v2386, %v2382
    %v2571 = vpack.c.b16 %v2387, %v2383
    %v2572 = vpack.c.b16 %v2388, %v2384
    %v2573 = vpack.c.b16 %v2393, %v2389
    %v2574 = vpack.c.b16 %v2394, %v2390
    %v2575 = vpack.c.b16 %v2395, %v2391
    %v2576 = vpack.c.b16 %v2396, %v2392
    %v2577 = vpack.c.b16 %v2401, %v2397
    %v2578 = vpack.c.b16 %v2402, %v2398
    %v2579 = vpack.c.b16 %v2403, %v2399
    %v2580 = vpack.c.b16 %v2404, %v2400
    %v2581 = vpack.c.b16 %v2409, %v2405
    %v2582 = vpack.c.b16 %v2410, %v2406
    %v2583 = vpack.c.b16 %v2411, %v2407
    %v2584 = vpack.c.b16 %v2412, %v2408
    %v2585 = vpack.c.b16 %v2417, %v2413
    %v2586 = vpack.c.b16 %v2418, %v2414
    %v2587 = vpack.c.b16 %v2419, %v2415
    %v2588 = vpack.c.b16 %v2420, %v2416
    %v2589 = vpack.c.b16 %v2425, %v2421
    %v2590 = vpack.c.b16 %v2426, %v2422
    %v2591 = vpack.c.b16 %v2427, %v2423
    %v2592 = vpack.c.b16 %v2428, %v2424
    %v2593 = vpack.c.b16 %v2433, %v2429
    %v2594 = vpack.c.b16 %v2434, %v2430
    %v2595 = vpack.c.b16 %v2435, %v2431
    %v2596 = vpack.c.b16 %v2436, %v2432
    %v2597 = vpack.c.b16 %v2441, %v2437
    %v2598 = vpack.c.b16 %v2442, %v2438
    %v2599 = vpack.c.b16 %v2443, %v2439
    %v2600 = vpack.c.b16 %v2444, %v2440
    %v2601 = vpack.c.b16 %v2449, %v2445
    %v2602 = vpack.c.b16 %v2450, %v2446
    %v2603 = vpack.c.b16 %v2451, %v2447
    %v2604 = vpack.c.b16 %v2452, %v2448
    %v2605 = vpack.c.b16 %v2457, %v2453
    %v2606 = vpack.c.b16 %v2458, %v2454
    %v2607 = vpack.c.b16 %v2459, %v2455
    %v2608 = vpack.c.b16 %v2460, %v2456
    %v2609 = vpack.c.b16 %v2465, %v2461
    %v2610 = vpack.c.b16 %v2466, %v2462
    %v2611 = vpack.c.b16 %v2467, %v2463
    %v2612 = vpack.c.b16 %v2468, %v2464
    %v2613 = vpack.c.b16 %v2473, %v2469
    %v2614 = vpack.c.b16 %v2474, %v2470
    %v2615 = vpack.c.b16 %v2475, %v2471
    %v2616 = vpack.c.b16 %v2476, %v2472
    %v2617 = vpack.c.b16 %v2481, %v2477
    %v2618 = vpack.c.b16 %v2482, %v2478
    %v2619 = vpack.c.b16 %v2483, %v2479
    %v2620 = vpack.c.b16 %v2484, %v2480
    %v2621 = vpack.c.b16 %v2489, %v2485
    %v2622 = vpack.c.b16 %v2490, %v2486
    %v2623 = vpack.c.b16 %v2491, %v2487
    %v2624 = vpack.c.b16 %v2492, %v2488
    %v2625 = vpack.c.b16 %v2497, %v2493
    %v2626 = vpack.c.b16 %v2498, %v2494
    %v2627 = vpack.c.b16 %v2499, %v2495
    %v2628 = vpack.c.b16 %v2500, %v2496
    %v2629 = vpack.c.b16 %v2505, %v2501
    %v2630 = vpack.c.b16 %v2506, %v2502
    %v2631 = vpack.c.b16 %v2507, %v2503
    %v2632 = vpack.c.b16 %v2508, %v2504
    %v2633 = vpack.c.b16 %v2513, %v2509
    %v2634 = vpack.c.b16 %v2514, %v2510
    %v2635 = vpack.c.b16 %v2515, %v2511
    %v2636 = vpack.c.b16 %v2516, %v2512
    %v2637 = vpack.c.b16 %v2521, %v2517
    %v2638 = vpack.c.b16 %v2522, %v2518
    %v2639 = vpack.c.b16 %v2523, %v2519
    %v2640 = vpack.c.b16 %v2524, %v2520
    %v2641 = vpack.c.b16 %v2529, %v2525
    %v2642 = vpack.c.b16 %v2530, %v2526
    %v2643 = vpack.c.b16 %v2531, %v2527
    %v2644 = vpack.c.b16 %v2532, %v2528
    %v2645 = vpack.c.b16 %v2537, %v2533
    %v2646 = vpack.c.b16 %v2538, %v2534
    %v2647 = vpack.c.b16 %v2539, %v2535
    %v2648 = vpack.c.b16 %v2540, %v2536
    %v2649 = vpack.c.b16 %v2545, %v2541
    %v2650 = vpack.c.b16 %v2546, %v2542
    %v2651 = vpack.c.b16 %v2547, %v2543
    %v2652 = vpack.c.b16 %v2548, %v2544
    %v2653 = vpack.c.b16 %v2553, %v2549
    %v2654 = vpack.c.b16 %v2554, %v2550
    %v2655 = vpack.c.b16 %v2555, %v2551
    %v2656 = vpack.c.b16 %v2556, %v2552
    %v2657 = vpack.c.b16 %v2561, %v2557
    %v2658 = vpack.c.b16 %v2562, %v2558
    %v2659 = vpack.c.b16 %v2563, %v2559
    %v2660 = vpack.c.b16 %v2564, %v2560
    %2757 = vmatprep.subr.bf16.mxu0 0
    %2758 = vmatpush1.bf16.msra.mxu0 %v1964
    %2759 = vmatprep.subr.bf16.mxu0 0
    %2760 = vmatpush1.bf16.msra.mxu0 %v1963
    %2761 = vmatprep.subr.bf16.mxu0 0
    %2762 = vmatpush1.bf16.msra.mxu0 %v1962
    %2763 = vmatprep.subr.bf16.mxu0 0
    %2764 = vmatpush1.bf16.msra.mxu0 %v1961
    %2765 = vmatprep.subr.bf16.mxu0 0
    %2766 = vmatpush1.bf16.msra.mxu0 %v1960
    %2767 = vmatprep.subr.bf16.mxu0 0
    %2768 = vmatpush1.bf16.msra.mxu0 %v1959
    %2769 = vmatprep.subr.bf16.mxu0 0
    %2770 = vmatpush1.bf16.msra.mxu0 %v1958
    %2771 = vmatprep.subr.bf16.mxu0 0
    %2772 = vmatpush1.bf16.msra.mxu0 %v1957
    %2773 = vmatprep.subr.bf16.mxu0 0
    %2774 = vmatpush2.bf16.msra.mxu0 %v1972
    %2775 = vmatprep.subr.bf16.mxu0 0
    %2776 = vmatpush2.bf16.msra.mxu0 %v1971
    %2777 = vmatprep.subr.bf16.mxu0 0
    %2778 = vmatpush2.bf16.msra.mxu0 %v1970
    %2779 = vmatprep.subr.bf16.mxu0 0
    %2780 = vmatpush2.bf16.msra.mxu0 %v1969
    %2781 = vmatprep.subr.bf16.mxu0 0
    %2782 = vmatpush2.bf16.msra.mxu0 %v1968
    %2783 = vmatprep.subr.bf16.mxu0 0
    %2784 = vmatpush2.bf16.msra.mxu0 %v1967
    %2785 = vmatprep.subr.bf16.mxu0 0
    %2786 = vmatpush2.bf16.msra.mxu0 %v1966
    %2787 = vmatprep.subr.bf16.mxu0 0
    %2788 = vmatpush2.bf16.msra.mxu0 %v1965
    %2789 = vmatprep.mubr.bf16.mxu0 %v2566
    %2790 = vmatmul.mubr.bf16.gmra.mxu0 %v2565
    %v2791 = vpop.f32.mrf.mxu0
    %v2792 = vadd.f32 %v2040, %v2791
    %v2793 = vpop.f32.mrf.mxu0
    %v2794 = vpop.f32.mrf.mxu0
    %v2795 = vadd.f32 %v2045, %v2794
    %v2796 = vpop.f32.mrf.mxu0
    %2797 = vmatprep.mubr.bf16.mxu0 %v2570
    %2798 = vmatmul.mubr.bf16.gmra.mxu0 %v2569
    %v2799 = vpop.f32.mrf.mxu0
    %v2800 = vadd.f32 %v2050, %v2799
    %v2801 = vpop.f32.mrf.mxu0
    %v2802 = vpop.f32.mrf.mxu0
    %v2803 = vadd.f32 %v2055, %v2802
    %v2804 = vpop.f32.mrf.mxu0
    %2805 = vmatprep.mubr.bf16.mxu0 %v2574
    %2806 = vmatmul.mubr.bf16.gmra.mxu0 %v2573
    %v2807 = vpop.f32.mrf.mxu0
    %v2808 = vadd.f32 %v2060, %v2807
    %v2809 = vpop.f32.mrf.mxu0
    %v2810 = vpop.f32.mrf.mxu0
    %v2811 = vadd.f32 %v2065, %v2810
    %v2812 = vpop.f32.mrf.mxu0
    %2813 = vmatprep.mubr.bf16.mxu0 %v2578
    %2814 = vmatmul.mubr.bf16.gmra.mxu0 %v2577
    %v2815 = vpop.f32.mrf.mxu0
    %v2816 = vadd.f32 %v2070, %v2815
    %v2817 = vpop.f32.mrf.mxu0
    %v2818 = vpop.f32.mrf.mxu0
    %v2819 = vadd.f32 %v2075, %v2818
    %v2820 = vpop.f32.mrf.mxu0
    %2821 = vmatprep.mubr.bf16.mxu0 %v2582
    %2822 = vmatmul.mubr.bf16.gmra.mxu0 %v2581
    %v2823 = vpop.f32.mrf.mxu0
    %v2824 = vadd.f32 %v2080, %v2823
    %v2825 = vpop.f32.mrf.mxu0
    %v2826 = vpop.f32.mrf.mxu0
    %v2827 = vadd.f32 %v2085, %v2826
    %v2828 = vpop.f32.mrf.mxu0
    %2829 = vmatprep.mubr.bf16.mxu0 %v2586
    %2830 = vmatmul.mubr.bf16.gmra.mxu0 %v2585
    %v2831 = vpop.f32.mrf.mxu0
    %v2832 = vadd.f32 %v2090, %v2831
    %v2833 = vpop.f32.mrf.mxu0
    %v2834 = vpop.f32.mrf.mxu0
    %v2835 = vadd.f32 %v2095, %v2834
    %v2836 = vpop.f32.mrf.mxu0
    %2837 = vmatprep.mubr.bf16.mxu0 %v2590
    %2838 = vmatmul.mubr.bf16.gmra.mxu0 %v2589
    %v2839 = vpop.f32.mrf.mxu0
    %v2840 = vadd.f32 %v2100, %v2839
    %v2841 = vpop.f32.mrf.mxu0
    %v2842 = vpop.f32.mrf.mxu0
    %v2843 = vadd.f32 %v2105, %v2842
    %v2844 = vpop.f32.mrf.mxu0
    %2845 = vmatprep.mubr.bf16.mxu0 %v2594
    %2846 = vmatmul.mubr.bf16.gmra.mxu0 %v2593
    %v2847 = vpop.f32.mrf.mxu0
    %v2848 = vadd.f32 %v2110, %v2847
    %v2849 = vpop.f32.mrf.mxu0
    %v2850 = vpop.f32.mrf.mxu0
    %v2851 = vadd.f32 %v2115, %v2850
    %v2852 = vpop.f32.mrf.mxu0
    %2853 = vmatprep.mubr.bf16.mxu0 %v2598
    %2854 = vmatmul.mubr.bf16.gmra.mxu0 %v2597
    %v2855 = vpop.f32.mrf.mxu0
    %v2856 = vadd.f32 %v2120, %v2855
    %v2857 = vpop.f32.mrf.mxu0
    %v2858 = vpop.f32.mrf.mxu0
    %v2859 = vadd.f32 %v2125, %v2858
    %v2860 = vpop.f32.mrf.mxu0
    %2861 = vmatprep.mubr.bf16.mxu0 %v2602
    %2862 = vmatmul.mubr.bf16.gmra.mxu0 %v2601
    %v2863 = vpop.f32.mrf.mxu0
    %v2864 = vadd.f32 %v2130, %v2863
    %v2865 = vpop.f32.mrf.mxu0
    %v2866 = vpop.f32.mrf.mxu0
    %v2867 = vadd.f32 %v2135, %v2866
    %v2868 = vpop.f32.mrf.mxu0
    %2869 = vmatprep.mubr.bf16.mxu0 %v2606
    %2870 = vmatmul.mubr.bf16.gmra.mxu0 %v2605
    %v2871 = vpop.f32.mrf.mxu0
    %v2872 = vadd.f32 %v2140, %v2871
    %v2873 = vpop.f32.mrf.mxu0
    %v2874 = vpop.f32.mrf.mxu0
    %v2875 = vadd.f32 %v2145, %v2874
    %v2876 = vpop.f32.mrf.mxu0
    %2877 = vmatprep.mubr.bf16.mxu0 %v2610
    %2878 = vmatmul.mubr.bf16.gmra.mxu0 %v2609
    %v2879 = vpop.f32.mrf.mxu0
    %v2880 = vadd.f32 %v2150, %v2879
    %v2881 = vpop.f32.mrf.mxu0
    %v2882 = vpop.f32.mrf.mxu0
    %v2883 = vadd.f32 %v2155, %v2882
    %v2884 = vpop.f32.mrf.mxu0
    %2885 = vmatprep.mubr.bf16.mxu0 %v2614
    %2886 = vmatmul.mubr.bf16.gmra.mxu0 %v2613
    %v2887 = vpop.f32.mrf.mxu0
    %v2888 = vadd.f32 %v2160, %v2887
    %v2889 = vpop.f32.mrf.mxu0
    %v2890 = vpop.f32.mrf.mxu0
    %v2891 = vadd.f32 %v2165, %v2890
    %v2892 = vpop.f32.mrf.mxu0
    %2893 = vmatprep.mubr.bf16.mxu0 %v2618
    %2894 = vmatmul.mubr.bf16.gmra.mxu0 %v2617
    %v2895 = vpop.f32.mrf.mxu0
    %v2896 = vadd.f32 %v2170, %v2895
    %v2897 = vpop.f32.mrf.mxu0
    %v2898 = vpop.f32.mrf.mxu0
    %v2899 = vadd.f32 %v2175, %v2898
    %v2900 = vpop.f32.mrf.mxu0
    %2901 = vmatprep.mubr.bf16.mxu0 %v2622
    %2902 = vmatmul.mubr.bf16.gmra.mxu0 %v2621
    %v2903 = vpop.f32.mrf.mxu0
    %v2904 = vadd.f32 %v2180, %v2903
    %v2905 = vpop.f32.mrf.mxu0
    %v2906 = vpop.f32.mrf.mxu0
    %v2907 = vadd.f32 %v2185, %v2906
    %v2908 = vpop.f32.mrf.mxu0
    %2909 = vmatprep.mubr.bf16.mxu0 %v2626
    %2910 = vmatmul.mubr.bf16.gmra.mxu0 %v2625
    %v2911 = vpop.f32.mrf.mxu0
    %v2912 = vadd.f32 %v2190, %v2911
    %v2913 = vpop.f32.mrf.mxu0
    %v2914 = vpop.f32.mrf.mxu0
    %v2915 = vadd.f32 %v2195, %v2914
    %v2916 = vpop.f32.mrf.mxu0
    %2917 = vmatprep.mubr.bf16.mxu0 %v2630
    %2918 = vmatmul.mubr.bf16.gmra.mxu0 %v2629
    %v2919 = vpop.f32.mrf.mxu0
    %v2920 = vadd.f32 %v2200, %v2919
    %v2921 = vpop.f32.mrf.mxu0
    %v2922 = vpop.f32.mrf.mxu0
    %v2923 = vadd.f32 %v2205, %v2922
    %v2924 = vpop.f32.mrf.mxu0
    %2925 = vmatprep.mubr.bf16.mxu0 %v2634
    %2926 = vmatmul.mubr.bf16.gmra.mxu0 %v2633
    %v2927 = vpop.f32.mrf.mxu0
    %v2928 = vadd.f32 %v2210, %v2927
    %v2929 = vpop.f32.mrf.mxu0
    %v2930 = vpop.f32.mrf.mxu0
    %v2931 = vadd.f32 %v2215, %v2930
    %v2932 = vpop.f32.mrf.mxu0
    %2933 = vmatprep.mubr.bf16.mxu0 %v2638
    %2934 = vmatmul.mubr.bf16.gmra.mxu0 %v2637
    %v2935 = vpop.f32.mrf.mxu0
    %v2936 = vadd.f32 %v2220, %v2935
    %v2937 = vpop.f32.mrf.mxu0
    %v2938 = vpop.f32.mrf.mxu0
    %v2939 = vadd.f32 %v2225, %v2938
    %v2940 = vpop.f32.mrf.mxu0
    %2941 = vmatprep.mubr.bf16.mxu0 %v2642
    %2942 = vmatmul.mubr.bf16.gmra.mxu0 %v2641
    %v2943 = vpop.f32.mrf.mxu0
    %v2944 = vadd.f32 %v2230, %v2943
    %v2945 = vpop.f32.mrf.mxu0
    %v2946 = vpop.f32.mrf.mxu0
    %v2947 = vadd.f32 %v2235, %v2946
    %v2948 = vpop.f32.mrf.mxu0
    %2949 = vmatprep.mubr.bf16.mxu0 %v2646
    %2950 = vmatmul.mubr.bf16.gmra.mxu0 %v2645
    %v2951 = vpop.f32.mrf.mxu0
    %v2952 = vadd.f32 %v2240, %v2951
    %v2953 = vpop.f32.mrf.mxu0
    %v2954 = vpop.f32.mrf.mxu0
    %v2955 = vadd.f32 %v2245, %v2954
    %v2956 = vpop.f32.mrf.mxu0
    %2957 = vmatprep.mubr.bf16.mxu0 %v2650
    %2958 = vmatmul.mubr.bf16.gmra.mxu0 %v2649
    %v2959 = vpop.f32.mrf.mxu0
    %v2960 = vadd.f32 %v2250, %v2959
    %v2961 = vpop.f32.mrf.mxu0
    %v2962 = vpop.f32.mrf.mxu0
    %v2963 = vadd.f32 %v2255, %v2962
    %v2964 = vpop.f32.mrf.mxu0
    %2965 = vmatprep.mubr.bf16.mxu0 %v2654
    %2966 = vmatmul.mubr.bf16.gmra.mxu0 %v2653
    %v2967 = vpop.f32.mrf.mxu0
    %v2968 = vadd.f32 %v2260, %v2967
    %v2969 = vpop.f32.mrf.mxu0
    %v2970 = vpop.f32.mrf.mxu0
    %v2971 = vadd.f32 %v2265, %v2970
    %v2972 = vpop.f32.mrf.mxu0
    %2973 = vmatprep.mubr.bf16.mxu0 %v2658
    %2974 = vmatmul.mubr.bf16.gmra.mxu0 %v2657
    %v2975 = vpop.f32.mrf.mxu0
    %v2976 = vadd.f32 %v2270, %v2975
    %v2977 = vpop.f32.mrf.mxu0
    %v2978 = vpop.f32.mrf.mxu0
    %v2979 = vadd.f32 %v2275, %v2978
    %v2980 = vpop.f32.mrf.mxu0
    %2981 = vdwg.mxu0
    %2982 = vmatprep.subr.bf16.mxu0 0
    %2983 = vmatpush1.bf16.msra.mxu0 %v1980
    %2984 = vmatprep.subr.bf16.mxu0 0
    %2985 = vmatpush1.bf16.msra.mxu0 %v1979
    %2986 = vmatprep.subr.bf16.mxu0 0
    %2987 = vmatpush1.bf16.msra.mxu0 %v1978
    %2988 = vmatprep.subr.bf16.mxu0 0
    %2989 = vmatpush1.bf16.msra.mxu0 %v1977
    %2990 = vmatprep.subr.bf16.mxu0 0
    %2991 = vmatpush1.bf16.msra.mxu0 %v1976
    %2992 = vmatprep.subr.bf16.mxu0 0
    %2993 = vmatpush1.bf16.msra.mxu0 %v1975
    %2994 = vmatprep.subr.bf16.mxu0 0
    %2995 = vmatpush1.bf16.msra.mxu0 %v1974
    %2996 = vmatprep.subr.bf16.mxu0 0
    %2997 = vmatpush1.bf16.msra.mxu0 %v1973
    %2998 = vmatprep.subr.bf16.mxu0 0
    %2999 = vmatpush2.bf16.msra.mxu0 %v1988
    %3000 = vmatprep.subr.bf16.mxu0 0
    %3001 = vmatpush2.bf16.msra.mxu0 %v1987
    %3002 = vmatprep.subr.bf16.mxu0 0
    %3003 = vmatpush2.bf16.msra.mxu0 %v1986
    %3004 = vmatprep.subr.bf16.mxu0 0
    %3005 = vmatpush2.bf16.msra.mxu0 %v1985
    %3006 = vmatprep.subr.bf16.mxu0 0
    %3007 = vmatpush2.bf16.msra.mxu0 %v1984
    %3008 = vmatprep.subr.bf16.mxu0 0
    %3009 = vmatpush2.bf16.msra.mxu0 %v1983
    %3010 = vmatprep.subr.bf16.mxu0 0
    %3011 = vmatpush2.bf16.msra.mxu0 %v1982
    %3012 = vmatprep.subr.bf16.mxu0 0
    %3013 = vmatpush2.bf16.msra.mxu0 %v1981
    %3014 = vmatprep.mubr.bf16.mxu0 %v2568
    %3015 = vmatmul.mubr.bf16.gmra.mxu0 %v2567
    %v3016 = vpop.f32.mrf.mxu0
    %v3017 = vadd.f32 %v2792, %v3016
    %v3018 = vpop.f32.mrf.mxu0
    %v3019 = vpop.f32.mrf.mxu0
    %v3020 = vadd.f32 %v2795, %v3019
    %v3021 = vpop.f32.mrf.mxu0
    %3022 = vmatprep.mubr.bf16.mxu0 %v2572
    %3023 = vmatmul.mubr.bf16.gmra.mxu0 %v2571
    %v3024 = vpop.f32.mrf.mxu0
    %v3025 = vadd.f32 %v2800, %v3024
    %v3026 = vpop.f32.mrf.mxu0
    %v3027 = vpop.f32.mrf.mxu0
    %v3028 = vadd.f32 %v2803, %v3027
    %v3029 = vpop.f32.mrf.mxu0
    %3030 = vmatprep.mubr.bf16.mxu0 %v2576
    %3031 = vmatmul.mubr.bf16.gmra.mxu0 %v2575
    %v3032 = vpop.f32.mrf.mxu0
    %v3033 = vadd.f32 %v2808, %v3032
    %v3034 = vpop.f32.mrf.mxu0
    %v3035 = vpop.f32.mrf.mxu0
    %v3036 = vadd.f32 %v2811, %v3035
    %v3037 = vpop.f32.mrf.mxu0
    %3038 = vmatprep.mubr.bf16.mxu0 %v2580
    %3039 = vmatmul.mubr.bf16.gmra.mxu0 %v2579
    %v3040 = vpop.f32.mrf.mxu0
    %v3041 = vadd.f32 %v2816, %v3040
    %v3042 = vpop.f32.mrf.mxu0
    %v3043 = vpop.f32.mrf.mxu0
    %v3044 = vadd.f32 %v2819, %v3043
    %v3045 = vpop.f32.mrf.mxu0
    %3046 = vmatprep.mubr.bf16.mxu0 %v2584
    %3047 = vmatmul.mubr.bf16.gmra.mxu0 %v2583
    %v3048 = vpop.f32.mrf.mxu0
    %v3049 = vadd.f32 %v2824, %v3048
    %v3050 = vpop.f32.mrf.mxu0
    %v3051 = vpop.f32.mrf.mxu0
    %v3052 = vadd.f32 %v2827, %v3051
    %v3053 = vpop.f32.mrf.mxu0
    %3054 = vmatprep.mubr.bf16.mxu0 %v2588
    %3055 = vmatmul.mubr.bf16.gmra.mxu0 %v2587
    %v3056 = vpop.f32.mrf.mxu0
    %v3057 = vadd.f32 %v2832, %v3056
    %v3058 = vpop.f32.mrf.mxu0
    %v3059 = vpop.f32.mrf.mxu0
    %v3060 = vadd.f32 %v2835, %v3059
    %v3061 = vpop.f32.mrf.mxu0
    %3062 = vmatprep.mubr.bf16.mxu0 %v2592
    %3063 = vmatmul.mubr.bf16.gmra.mxu0 %v2591
    %v3064 = vpop.f32.mrf.mxu0
    %v3065 = vadd.f32 %v2840, %v3064
    %v3066 = vpop.f32.mrf.mxu0
    %v3067 = vpop.f32.mrf.mxu0
    %v3068 = vadd.f32 %v2843, %v3067
    %v3069 = vpop.f32.mrf.mxu0
    %3070 = vmatprep.mubr.bf16.mxu0 %v2596
    %3071 = vmatmul.mubr.bf16.gmra.mxu0 %v2595
    %v3072 = vpop.f32.mrf.mxu0
    %v3073 = vadd.f32 %v2848, %v3072
    %v3074 = vpop.f32.mrf.mxu0
    %v3075 = vpop.f32.mrf.mxu0
    %v3076 = vadd.f32 %v2851, %v3075
    %v3077 = vpop.f32.mrf.mxu0
    %3078 = vmatprep.mubr.bf16.mxu0 %v2600
    %3079 = vmatmul.mubr.bf16.gmra.mxu0 %v2599
    %v3080 = vpop.f32.mrf.mxu0
    %v3081 = vadd.f32 %v2856, %v3080
    %v3082 = vpop.f32.mrf.mxu0
    %v3083 = vpop.f32.mrf.mxu0
    %v3084 = vadd.f32 %v2859, %v3083
    %v3085 = vpop.f32.mrf.mxu0
    %3086 = vmatprep.mubr.bf16.mxu0 %v2604
    %3087 = vmatmul.mubr.bf16.gmra.mxu0 %v2603
    %v3088 = vpop.f32.mrf.mxu0
    %v3089 = vadd.f32 %v2864, %v3088
    %v3090 = vpop.f32.mrf.mxu0
    %v3091 = vpop.f32.mrf.mxu0
    %v3092 = vadd.f32 %v2867, %v3091
    %v3093 = vpop.f32.mrf.mxu0
    %3094 = vmatprep.mubr.bf16.mxu0 %v2608
    %3095 = vmatmul.mubr.bf16.gmra.mxu0 %v2607
    %v3096 = vpop.f32.mrf.mxu0
    %v3097 = vadd.f32 %v2872, %v3096
    %v3098 = vpop.f32.mrf.mxu0
    %v3099 = vpop.f32.mrf.mxu0
    %v3100 = vadd.f32 %v2875, %v3099
    %v3101 = vpop.f32.mrf.mxu0
    %3102 = vmatprep.mubr.bf16.mxu0 %v2612
    %3103 = vmatmul.mubr.bf16.gmra.mxu0 %v2611
    %v3104 = vpop.f32.mrf.mxu0
    %v3105 = vadd.f32 %v2880, %v3104
    %v3106 = vpop.f32.mrf.mxu0
    %v3107 = vpop.f32.mrf.mxu0
    %v3108 = vadd.f32 %v2883, %v3107
    %v3109 = vpop.f32.mrf.mxu0
    %3110 = vmatprep.mubr.bf16.mxu0 %v2616
    %3111 = vmatmul.mubr.bf16.gmra.mxu0 %v2615
    %v3112 = vpop.f32.mrf.mxu0
    %v3113 = vadd.f32 %v2888, %v3112
    %v3114 = vpop.f32.mrf.mxu0
    %v3115 = vpop.f32.mrf.mxu0
    %v3116 = vadd.f32 %v2891, %v3115
    %v3117 = vpop.f32.mrf.mxu0
    %3118 = vmatprep.mubr.bf16.mxu0 %v2620
    %3119 = vmatmul.mubr.bf16.gmra.mxu0 %v2619
    %v3120 = vpop.f32.mrf.mxu0
    %v3121 = vadd.f32 %v2896, %v3120
    %v3122 = vpop.f32.mrf.mxu0
    %v3123 = vpop.f32.mrf.mxu0
    %v3124 = vadd.f32 %v2899, %v3123
    %v3125 = vpop.f32.mrf.mxu0
    %3126 = vmatprep.mubr.bf16.mxu0 %v2624
    %3127 = vmatmul.mubr.bf16.gmra.mxu0 %v2623
    %v3128 = vpop.f32.mrf.mxu0
    %v3129 = vadd.f32 %v2904, %v3128
    %v3130 = vpop.f32.mrf.mxu0
    %v3131 = vpop.f32.mrf.mxu0
    %v3132 = vadd.f32 %v2907, %v3131
    %v3133 = vpop.f32.mrf.mxu0
    %3134 = vmatprep.mubr.bf16.mxu0 %v2628
    %3135 = vmatmul.mubr.bf16.gmra.mxu0 %v2627
    %v3136 = vpop.f32.mrf.mxu0
    %v3137 = vadd.f32 %v2912, %v3136
    %v3138 = vpop.f32.mrf.mxu0
    %v3139 = vpop.f32.mrf.mxu0
    %v3140 = vadd.f32 %v2915, %v3139
    %v3141 = vpop.f32.mrf.mxu0
    %3142 = vmatprep.mubr.bf16.mxu0 %v2632
    %3143 = vmatmul.mubr.bf16.gmra.mxu0 %v2631
    %v3144 = vpop.f32.mrf.mxu0
    %v3145 = vadd.f32 %v2920, %v3144
    %v3146 = vpop.f32.mrf.mxu0
    %v3147 = vpop.f32.mrf.mxu0
    %v3148 = vadd.f32 %v2923, %v3147
    %v3149 = vpop.f32.mrf.mxu0
    %3150 = vmatprep.mubr.bf16.mxu0 %v2636
    %3151 = vmatmul.mubr.bf16.gmra.mxu0 %v2635
    %v3152 = vpop.f32.mrf.mxu0
    %v3153 = vadd.f32 %v2928, %v3152
    %v3154 = vpop.f32.mrf.mxu0
    %v3155 = vpop.f32.mrf.mxu0
    %v3156 = vadd.f32 %v2931, %v3155
    %v3157 = vpop.f32.mrf.mxu0
    %3158 = vmatprep.mubr.bf16.mxu0 %v2640
    %3159 = vmatmul.mubr.bf16.gmra.mxu0 %v2639
    %v3160 = vpop.f32.mrf.mxu0
    %v3161 = vadd.f32 %v2936, %v3160
    %v3162 = vpop.f32.mrf.mxu0
    %v3163 = vpop.f32.mrf.mxu0
    %v3164 = vadd.f32 %v2939, %v3163
    %v3165 = vpop.f32.mrf.mxu0
    %3166 = vmatprep.mubr.bf16.mxu0 %v2644
    %3167 = vmatmul.mubr.bf16.gmra.mxu0 %v2643
    %v3168 = vpop.f32.mrf.mxu0
    %v3169 = vadd.f32 %v2944, %v3168
    %v3170 = vpop.f32.mrf.mxu0
    %v3171 = vpop.f32.mrf.mxu0
    %v3172 = vadd.f32 %v2947, %v3171
    %v3173 = vpop.f32.mrf.mxu0
    %3174 = vmatprep.mubr.bf16.mxu0 %v2648
    %3175 = vmatmul.mubr.bf16.gmra.mxu0 %v2647
    %v3176 = vpop.f32.mrf.mxu0
    %v3177 = vadd.f32 %v2952, %v3176
    %v3178 = vpop.f32.mrf.mxu0
    %v3179 = vpop.f32.mrf.mxu0
    %v3180 = vadd.f32 %v2955, %v3179
    %v3181 = vpop.f32.mrf.mxu0
    %3182 = vmatprep.mubr.bf16.mxu0 %v2652
    %3183 = vmatmul.mubr.bf16.gmra.mxu0 %v2651
    %v3184 = vpop.f32.mrf.mxu0
    %v3185 = vadd.f32 %v2960, %v3184
    %v3186 = vpop.f32.mrf.mxu0
    %v3187 = vpop.f32.mrf.mxu0
    %v3188 = vadd.f32 %v2963, %v3187
    %v3189 = vpop.f32.mrf.mxu0
    %3190 = vmatprep.mubr.bf16.mxu0 %v2656
    %3191 = vmatmul.mubr.bf16.gmra.mxu0 %v2655
    %v3192 = vpop.f32.mrf.mxu0
    %v3193 = vadd.f32 %v2968, %v3192
    %v3194 = vpop.f32.mrf.mxu0
    %v3195 = vpop.f32.mrf.mxu0
    %v3196 = vadd.f32 %v2971, %v3195
    %v3197 = vpop.f32.mrf.mxu0
    %3198 = vmatprep.mubr.bf16.mxu0 %v2660
    %3199 = vmatmul.mubr.bf16.gmra.mxu0 %v2659
    %v3200 = vpop.f32.mrf.mxu0
    %v3201 = vadd.f32 %v2976, %v3200
    %v3202 = vpop.f32.mrf.mxu0
    %v3203 = vpop.f32.mrf.mxu0
    %v3204 = vadd.f32 %v2979, %v3203
    %v3205 = vpop.f32.mrf.mxu0
    %3206 = vdwg.mxu0
    %v3207 = vmax.f32 %v3017, 0.0
    %v3208 = vmax.f32 %v3020, 0.0
    %v3209 = vmax.f32 %v3025, 0.0
    %v3210 = vmax.f32 %v3028, 0.0
    %v3211 = vmax.f32 %v3033, 0.0
    %v3212 = vmax.f32 %v3036, 0.0
    %v3213 = vmax.f32 %v3041, 0.0
    %v3214 = vmax.f32 %v3044, 0.0
    %v3215 = vmax.f32 %v3049, 0.0
    %v3216 = vmax.f32 %v3052, 0.0
    %v3217 = vmax.f32 %v3057, 0.0
    %v3218 = vmax.f32 %v3060, 0.0
    %v3219 = vmax.f32 %v3065, 0.0
    %v3220 = vmax.f32 %v3068, 0.0
    %v3221 = vmax.f32 %v3073, 0.0
    %v3222 = vmax.f32 %v3076, 0.0
    %v3223 = vmax.f32 %v3081, 0.0
    %v3224 = vmax.f32 %v3084, 0.0
    %v3225 = vmax.f32 %v3089, 0.0
    %v3226 = vmax.f32 %v3092, 0.0
    %v3227 = vmax.f32 %v3097, 0.0
    %v3228 = vmax.f32 %v3100, 0.0
    %v3229 = vmax.f32 %v3105, 0.0
    %v3230 = vmax.f32 %v3108, 0.0
    %v3231 = vmax.f32 %v3113, 0.0
    %v3232 = vmax.f32 %v3116, 0.0
    %v3233 = vmax.f32 %v3121, 0.0
    %v3234 = vmax.f32 %v3124, 0.0
    %v3235 = vmax.f32 %v3129, 0.0
    %v3236 = vmax.f32 %v3132, 0.0
    %v3237 = vmax.f32 %v3137, 0.0
    %v3238 = vmax.f32 %v3140, 0.0
    %v3239 = vmax.f32 %v3145, 0.0
    %v3240 = vmax.f32 %v3148, 0.0
    %v3241 = vmax.f32 %v3153, 0.0
    %v3242 = vmax.f32 %v3156, 0.0
    %v3243 = vmax.f32 %v3161, 0.0
    %v3244 = vmax.f32 %v3164, 0.0
    %v3245 = vmax.f32 %v3169, 0.0
    %v3246 = vmax.f32 %v3172, 0.0
    %v3247 = vmax.f32 %v3177, 0.0
    %v3248 = vmax.f32 %v3180, 0.0
    %v3249 = vmax.f32 %v3185, 0.0
    %v3250 = vmax.f32 %v3188, 0.0
    %v3251 = vmax.f32 %v3193, 0.0
    %v3252 = vmax.f32 %v3196, 0.0
    %v3253 = vmax.f32 %v3201, 0.0
    %v3254 = vmax.f32 %v3204, 0.0
    %v3255 = vld [vmem:[#allocation11] sm:$0xff]
    %v3256 = vld [vmem:[#allocation11 + $0x8] sm:$0xff]
    %v3257 = vld [vmem:[#allocation11 + $0x10] sm:$0xff]
    %v3258 = vld [vmem:[#allocation11 + $0x18] sm:$0xff]
    %v3259 = vld [vmem:[#allocation11 + $0x20] sm:$0xff]
    %v3260 = vld [vmem:[#allocation11 + $0x28] sm:$0xff]
    %v3261 = vld [vmem:[#allocation11 + $0x30] sm:$0xff]
    %v3262 = vld [vmem:[#allocation11 + $0x38] sm:$0xff]
    %v3263 = vld [vmem:[#allocation11 + $0x40] sm:$0xff]
    %v3264 = vld [vmem:[#allocation11 + $0x48] sm:$0xff]
    %v3265 = vld [vmem:[#allocation11 + $0x50] sm:$0xff]
    %v3266 = vld [vmem:[#allocation11 + $0x58] sm:$0xff]
    %v3267 = vld [vmem:[#allocation11 + $0x60] sm:$0xff]
    %v3268 = vld [vmem:[#allocation11 + $0x68] sm:$0xff]
    %v3269 = vld [vmem:[#allocation11 + $0x70] sm:$0xff]
    %v3270 = vld [vmem:[#allocation11 + $0x78] sm:$0xff]
    %v3271 = vld [vmem:[#allocation11 + $0x80] sm:$0xff]
    %v3272 = vld [vmem:[#allocation11 + $0x88] sm:$0xff]
    %v3273 = vld [vmem:[#allocation11 + $0x90] sm:$0xff]
    %v3274 = vld [vmem:[#allocation11 + $0x98] sm:$0xff]
    %v3275 = vld [vmem:[#allocation11 + $0xa0] sm:$0xff]
    %v3276 = vld [vmem:[#allocation11 + $0xa8] sm:$0xff]
    %v3277 = vld [vmem:[#allocation11 + $0xb0] sm:$0xff]
    %v3278 = vld [vmem:[#allocation11 + $0xb8] sm:$0xff]
    %v3279 = vld [vmem:[#allocation11 + $0xc0] sm:$0xff]
    %v3280 = vld [vmem:[#allocation11 + $0xc8] sm:$0xff]
    %v3281 = vld [vmem:[#allocation11 + $0xd0] sm:$0xff]
    %v3282 = vld [vmem:[#allocation11 + $0xd8] sm:$0xff]
    %v3283 = vld [vmem:[#allocation11 + $0xe0] sm:$0xff]
    %v3284 = vld [vmem:[#allocation11 + $0xe8] sm:$0xff]
    %v3285 = vld [vmem:[#allocation11 + $0xf0] sm:$0xff]
    %v3286 = vld [vmem:[#allocation11 + $0xf8] sm:$0xff]
    %v3287 = vld [vmem:[#allocation11 + $0x100] sm:$0xff]
    %v3288 = vld [vmem:[#allocation11 + $0x108] sm:$0xff]
    %v3289 = vld [vmem:[#allocation11 + $0x110] sm:$0xff]
    %v3290 = vld [vmem:[#allocation11 + $0x118] sm:$0xff]
    %v3291 = vld [vmem:[#allocation11 + $0x120] sm:$0xff]
    %v3292 = vld [vmem:[#allocation11 + $0x128] sm:$0xff]
    %v3293 = vld [vmem:[#allocation11 + $0x130] sm:$0xff]
    %v3294 = vld [vmem:[#allocation11 + $0x138] sm:$0xff]
    %v3295 = vld [vmem:[#allocation11 + $0x140] sm:$0xff]
    %v3296 = vld [vmem:[#allocation11 + $0x148] sm:$0xff]
    %v3297 = vld [vmem:[#allocation11 + $0x150] sm:$0xff]
    %v3298 = vld [vmem:[#allocation11 + $0x158] sm:$0xff]
    %v3299 = vld [vmem:[#allocation11 + $0x160] sm:$0xff]
    %v3300 = vld [vmem:[#allocation11 + $0x168] sm:$0xff]
    %v3301 = vld [vmem:[#allocation11 + $0x170] sm:$0xff]
    %v3302 = vld [vmem:[#allocation11 + $0x178] sm:$0xff]
    %3304 = vset.pattern.permute.xlu0 0
    %3305 = vperm.xlu0 %3304, %v3255
    %v3306 = vpop.permute.xlu0 %3305
    %3309 = vset.pattern.permute.xlu0 0
    %3310 = vperm.xlu0 %3309, %v3256
    %v3311 = vpop.permute.xlu0 %3310
    %3314 = vset.pattern.permute.xlu0 0
    %3315 = vperm.xlu0 %3314, %v3257
    %v3316 = vpop.permute.xlu0 %3315
    %3319 = vset.pattern.permute.xlu0 0
    %3320 = vperm.xlu0 %3319, %v3258
    %v3321 = vpop.permute.xlu0 %3320
    %3324 = vset.pattern.permute.xlu0 0
    %3325 = vperm.xlu0 %3324, %v3259
    %v3326 = vpop.permute.xlu0 %3325
    %3329 = vset.pattern.permute.xlu0 0
    %3330 = vperm.xlu0 %3329, %v3260
    %v3331 = vpop.permute.xlu0 %3330
    %3334 = vset.pattern.permute.xlu0 0
    %3335 = vperm.xlu0 %3334, %v3261
    %v3336 = vpop.permute.xlu0 %3335
    %3339 = vset.pattern.permute.xlu0 0
    %3340 = vperm.xlu0 %3339, %v3262
    %v3341 = vpop.permute.xlu0 %3340
    %3344 = vset.pattern.permute.xlu0 0
    %3345 = vperm.xlu0 %3344, %v3263
    %v3346 = vpop.permute.xlu0 %3345
    %3349 = vset.pattern.permute.xlu0 0
    %3350 = vperm.xlu0 %3349, %v3264
    %v3351 = vpop.permute.xlu0 %3350
    %3354 = vset.pattern.permute.xlu0 0
    %3355 = vperm.xlu0 %3354, %v3265
    %v3356 = vpop.permute.xlu0 %3355
    %3359 = vset.pattern.permute.xlu0 0
    %3360 = vperm.xlu0 %3359, %v3266
    %v3361 = vpop.permute.xlu0 %3360
    %3364 = vset.pattern.permute.xlu0 0
    %3365 = vperm.xlu0 %3364, %v3267
    %v3366 = vpop.permute.xlu0 %3365
    %3369 = vset.pattern.permute.xlu0 0
    %3370 = vperm.xlu0 %3369, %v3268
    %v3371 = vpop.permute.xlu0 %3370
    %3374 = vset.pattern.permute.xlu0 0
    %3375 = vperm.xlu0 %3374, %v3269
    %v3376 = vpop.permute.xlu0 %3375
    %3379 = vset.pattern.permute.xlu0 0
    %3380 = vperm.xlu0 %3379, %v3270
    %v3381 = vpop.permute.xlu0 %3380
    %3384 = vset.pattern.permute.xlu0 0
    %3385 = vperm.xlu0 %3384, %v3271
    %v3386 = vpop.permute.xlu0 %3385
    %3389 = vset.pattern.permute.xlu0 0
    %3390 = vperm.xlu0 %3389, %v3272
    %v3391 = vpop.permute.xlu0 %3390
    %3394 = vset.pattern.permute.xlu0 0
    %3395 = vperm.xlu0 %3394, %v3273
    %v3396 = vpop.permute.xlu0 %3395
    %3399 = vset.pattern.permute.xlu0 0
    %3400 = vperm.xlu0 %3399, %v3274
    %v3401 = vpop.permute.xlu0 %3400
    %3404 = vset.pattern.permute.xlu0 0
    %3405 = vperm.xlu0 %3404, %v3275
    %v3406 = vpop.permute.xlu0 %3405
    %3409 = vset.pattern.permute.xlu0 0
    %3410 = vperm.xlu0 %3409, %v3276
    %v3411 = vpop.permute.xlu0 %3410
    %3414 = vset.pattern.permute.xlu0 0
    %3415 = vperm.xlu0 %3414, %v3277
    %v3416 = vpop.permute.xlu0 %3415
    %3419 = vset.pattern.permute.xlu0 0
    %3420 = vperm.xlu0 %3419, %v3278
    %v3421 = vpop.permute.xlu0 %3420
    %3424 = vset.pattern.permute.xlu0 0
    %3425 = vperm.xlu0 %3424, %v3279
    %v3426 = vpop.permute.xlu0 %3425
    %3429 = vset.pattern.permute.xlu0 0
    %3430 = vperm.xlu0 %3429, %v3280
    %v3431 = vpop.permute.xlu0 %3430
    %3434 = vset.pattern.permute.xlu0 0
    %3435 = vperm.xlu0 %3434, %v3281
    %v3436 = vpop.permute.xlu0 %3435
    %3439 = vset.pattern.permute.xlu0 0
    %3440 = vperm.xlu0 %3439, %v3282
    %v3441 = vpop.permute.xlu0 %3440
    %3444 = vset.pattern.permute.xlu0 0
    %3445 = vperm.xlu0 %3444, %v3283
    %v3446 = vpop.permute.xlu0 %3445
    %3449 = vset.pattern.permute.xlu0 0
    %3450 = vperm.xlu0 %3449, %v3284
    %v3451 = vpop.permute.xlu0 %3450
    %3454 = vset.pattern.permute.xlu0 0
    %3455 = vperm.xlu0 %3454, %v3285
    %v3456 = vpop.permute.xlu0 %3455
    %3459 = vset.pattern.permute.xlu0 0
    %3460 = vperm.xlu0 %3459, %v3286
    %v3461 = vpop.permute.xlu0 %3460
    %3464 = vset.pattern.permute.xlu0 0
    %3465 = vperm.xlu0 %3464, %v3287
    %v3466 = vpop.permute.xlu0 %3465
    %3469 = vset.pattern.permute.xlu0 0
    %3470 = vperm.xlu0 %3469, %v3288
    %v3471 = vpop.permute.xlu0 %3470
    %3474 = vset.pattern.permute.xlu0 0
    %3475 = vperm.xlu0 %3474, %v3289
    %v3476 = vpop.permute.xlu0 %3475
    %3479 = vset.pattern.permute.xlu0 0
    %3480 = vperm.xlu0 %3479, %v3290
    %v3481 = vpop.permute.xlu0 %3480
    %3484 = vset.pattern.permute.xlu0 0
    %3485 = vperm.xlu0 %3484, %v3291
    %v3486 = vpop.permute.xlu0 %3485
    %3489 = vset.pattern.permute.xlu0 0
    %3490 = vperm.xlu0 %3489, %v3292
    %v3491 = vpop.permute.xlu0 %3490
    %3494 = vset.pattern.permute.xlu0 0
    %3495 = vperm.xlu0 %3494, %v3293
    %v3496 = vpop.permute.xlu0 %3495
    %3499 = vset.pattern.permute.xlu0 0
    %3500 = vperm.xlu0 %3499, %v3294
    %v3501 = vpop.permute.xlu0 %3500
    %3504 = vset.pattern.permute.xlu0 0
    %3505 = vperm.xlu0 %3504, %v3295
    %v3506 = vpop.permute.xlu0 %3505
    %3509 = vset.pattern.permute.xlu0 0
    %3510 = vperm.xlu0 %3509, %v3296
    %v3511 = vpop.permute.xlu0 %3510
    %3514 = vset.pattern.permute.xlu0 0
    %3515 = vperm.xlu0 %3514, %v3297
    %v3516 = vpop.permute.xlu0 %3515
    %3519 = vset.pattern.permute.xlu0 0
    %3520 = vperm.xlu0 %3519, %v3298
    %v3521 = vpop.permute.xlu0 %3520
    %3524 = vset.pattern.permute.xlu0 0
    %3525 = vperm.xlu0 %3524, %v3299
    %v3526 = vpop.permute.xlu0 %3525
    %3529 = vset.pattern.permute.xlu0 0
    %3530 = vperm.xlu0 %3529, %v3300
    %v3531 = vpop.permute.xlu0 %3530
    %3534 = vset.pattern.permute.xlu0 0
    %3535 = vperm.xlu0 %3534, %v3301
    %v3536 = vpop.permute.xlu0 %3535
    %3539 = vset.pattern.permute.xlu0 0
    %3540 = vperm.xlu0 %3539, %v3302
    %v3541 = vpop.permute.xlu0 %3540
    %v3543 = vmul.f32 %v3207, %v3306
    %v3544 = vmul.f32 %v3208, %v3311
    %v3545 = vmul.f32 %v3209, %v3316
    %v3546 = vmul.f32 %v3210, %v3321
    %v3547 = vmul.f32 %v3211, %v3326
    %v3548 = vmul.f32 %v3212, %v3331
    %v3549 = vmul.f32 %v3213, %v3336
    %v3550 = vmul.f32 %v3214, %v3341
    %v3551 = vmul.f32 %v3215, %v3346
    %v3552 = vmul.f32 %v3216, %v3351
    %v3553 = vmul.f32 %v3217, %v3356
    %v3554 = vmul.f32 %v3218, %v3361
    %v3555 = vmul.f32 %v3219, %v3366
    %v3556 = vmul.f32 %v3220, %v3371
    %v3557 = vmul.f32 %v3221, %v3376
    %v3558 = vmul.f32 %v3222, %v3381
    %v3559 = vmul.f32 %v3223, %v3386
    %v3560 = vmul.f32 %v3224, %v3391
    %v3561 = vmul.f32 %v3225, %v3396
    %v3562 = vmul.f32 %v3226, %v3401
    %v3563 = vmul.f32 %v3227, %v3406
    %v3564 = vmul.f32 %v3228, %v3411
    %v3565 = vmul.f32 %v3229, %v3416
    %v3566 = vmul.f32 %v3230, %v3421
    %v3567 = vmul.f32 %v3231, %v3426
    %v3568 = vmul.f32 %v3232, %v3431
    %v3569 = vmul.f32 %v3233, %v3436
    %v3570 = vmul.f32 %v3234, %v3441
    %v3571 = vmul.f32 %v3235, %v3446
    %v3572 = vmul.f32 %v3236, %v3451
    %v3573 = vmul.f32 %v3237, %v3456
    %v3574 = vmul.f32 %v3238, %v3461
    %v3575 = vmul.f32 %v3239, %v3466
    %v3576 = vmul.f32 %v3240, %v3471
    %v3577 = vmul.f32 %v3241, %v3476
    %v3578 = vmul.f32 %v3242, %v3481
    %v3579 = vmul.f32 %v3243, %v3486
    %v3580 = vmul.f32 %v3244, %v3491
    %v3581 = vmul.f32 %v3245, %v3496
    %v3582 = vmul.f32 %v3246, %v3501
    %v3583 = vmul.f32 %v3247, %v3506
    %v3584 = vmul.f32 %v3248, %v3511
    %v3585 = vmul.f32 %v3249, %v3516
    %v3586 = vmul.f32 %v3250, %v3521
    %v3587 = vmul.f32 %v3251, %v3526
    %v3588 = vmul.f32 %v3252, %v3531
    %v3589 = vmul.f32 %v3253, %v3536
    %v3590 = vmul.f32 %v3254, %v3541
    %v3591 = vadd.f32 %v3543, %v3544
    %v3592 = vadd.f32 %v3591, %v3545
    %v3593 = vadd.f32 %v3592, %v3546
    %v3594 = vadd.f32 %v3593, %v3547
    %v3595 = vadd.f32 %v3594, %v3548
    %v3596 = vadd.f32 %v3595, %v3549
    %v3597 = vadd.f32 %v3596, %v3550
    %v3598 = vadd.f32 %v3597, %v3551
    %v3599 = vadd.f32 %v3598, %v3552
    %v3600 = vadd.f32 %v3599, %v3553
    %v3601 = vadd.f32 %v3600, %v3554
    %v3602 = vadd.f32 %v3601, %v3555
    %v3603 = vadd.f32 %v3602, %v3556
    %v3604 = vadd.f32 %v3603, %v3557
    %v3605 = vadd.f32 %v3604, %v3558
    %v3606 = vadd.f32 %v3605, %v3559
    %v3607 = vadd.f32 %v3606, %v3560
    %v3608 = vadd.f32 %v3607, %v3561
    %v3609 = vadd.f32 %v3608, %v3562
    %v3610 = vadd.f32 %v3609, %v3563
    %v3611 = vadd.f32 %v3610, %v3564
    %v3612 = vadd.f32 %v3611, %v3565
    %v3613 = vadd.f32 %v3612, %v3566
    %v3614 = vadd.f32 %v3613, %v3567
    %v3615 = vadd.f32 %v3614, %v3568
    %v3616 = vadd.f32 %v3615, %v3569
    %v3617 = vadd.f32 %v3616, %v3570
    %v3618 = vadd.f32 %v3617, %v3571
    %v3619 = vadd.f32 %v3618, %v3572
    %v3620 = vadd.f32 %v3619, %v3573
    %v3621 = vadd.f32 %v3620, %v3574
    %v3622 = vadd.f32 %v3621, %v3575
    %v3623 = vadd.f32 %v3622, %v3576
    %v3624 = vadd.f32 %v3623, %v3577
    %v3625 = vadd.f32 %v3624, %v3578
    %v3626 = vadd.f32 %v3625, %v3579
    %v3627 = vadd.f32 %v3626, %v3580
    %v3628 = vadd.f32 %v3627, %v3581
    %v3629 = vadd.f32 %v3628, %v3582
    %v3630 = vadd.f32 %v3629, %v3583
    %v3631 = vadd.f32 %v3630, %v3584
    %v3632 = vadd.f32 %v3631, %v3585
    %v3633 = vadd.f32 %v3632, %v3586
    %v3634 = vadd.f32 %v3633, %v3587
    %v3635 = vadd.f32 %v3634, %v3588
    %v3636 = vadd.f32 %v3635, %v3589
    %v3637 = vadd.f32 %v3636, %v3590
    %v3638 = vrot.slane %v3637, 4
    %v3639 = vadd.f32 %v3637, %v3638
    %v3640 = vrot.slane %v3639, 2
    %v3641 = vadd.f32 %v3639, %v3640
    %v3642 = vrot.slane %v3641, 1
    %v3643 = vadd.f32 %v3641, %v3642
    %v3644 = vld [vmem:[#allocation2] sm:$0x1]
    %3646 = vset.pattern.permute.xlu0 0
    %3647 = vperm.xlu0 %3646, %v3644
    %v3648 = vpop.permute.xlu0 %3647
    %v3650 = vlaneseq
    %v3651 = vshrl.u32 %v3650, 7
    %v3652 = vsub.s32 0, %v3651
    %v3653 = vrot.slane %v3648, %v3652
    %v3654 = vadd.f32 %v3643, %v3653
    %3655 = vst [vmem:[%s9] sm:$0x1] %v3654
    // Predicated region
    $region62: #{critic_forward.1} parent=1 // pred_check
      _
    $region63: #{critic_forward.1} parent=1 // pred_check_branch
      %3657 = sbr.rel (0) target = $region65
    $region64: #{critic_forward.1} parent=1 // pred_region
      _
    $region65: #{critic_forward.1} parent=1 // pred_fallthru
      _
    // Predicated region
    $region66: #{critic_forward.1} parent=1 // pred_check
      _
    $region67: #{critic_forward.1} parent=1 // pred_check_branch
      %3659 = sbr.rel (0) target = $region69
    $region68: #{critic_forward.1} parent=1 // pred_region
      _
    $region69: #{critic_forward.1} parent=1 // pred_fallthru
      _
    %3660 = vsyncpa [#allocation4], 1
    %3661 = vsyncpa [#allocation6], 1
    %3662 = vsyncpa [#allocation9], 1
    %3663 = vsyncpa [#allocation12], 1

</llo_original>
